<compile_context>
chip_gen: v6e
topology: v6e:2x2x1
jax: 0.10.0
libtpu: 0.0.40
codegen_flags: <defaults>
</compile_context>

<pallas_src>
import jax
import jax.numpy as jnp
import numpy as np
from jax.experimental import pallas as pl
from jax.experimental.pallas import tpu as pltpu

LN_EPS = 1e-5

_CONTRACT00 = (((0,), (0,)), ((), ()))   # A^T @ B expressed as a dot_general


def _round_up(v, m):
    return (v + m - 1) // m * m


def _layernorm(h, gamma, beta):
    # two-pass mean/variance (robust); rsqrt goes to the EUP.
    mean = jnp.mean(h, axis=-1, keepdims=True)
    c = h - mean
    var = jnp.mean(c * c, axis=-1, keepdims=True)
    return c * jax.lax.rsqrt(var + LN_EPS) * gamma + beta


def _make_kernel(nb_layers):
    """Ref order: tgt[2tE,1] gathered[2tE,D] x_tile[tN,D], weights...,
    out[tN,out_pad], mi^T scratch[D,tN] (transposed accumulator)."""

    def kernel(*refs):
        tgt_ref, g_ref, x_tile_ref = refs[:3]
        out_ref = refs[-2]
        mi_acc = refs[-1]
        p = refs[3:-2]

        nj = pl.program_id(0)          # node tile   (parallel)
        ek = pl.program_id(1)          # edge tile   (reduction)
        n_ek = pl.num_programs(1)

        @pl.when(ek == 0)
        def _zero_acc():
            mi_acc[...] = jnp.zeros_like(mi_acc)

        t_n = mi_acc.shape[1]
        g = g_ref[...]                               # [2tE, D] = e * x[src]
        tgt = tgt_ref[...] - nj * t_n                # [2tE, 1] shifted targets
        two_e = g.shape[0]

        # 0/1 scatter one-hot restricted to this node tile (edge weight is
        # already folded into `gathered` by the wrapper).
        lane_iota = jax.lax.broadcasted_iota(jnp.int32, (two_e, t_n), 1)
        amat = (lane_iota == tgt).astype(jnp.float32)   # [2tE, tN]

        # mi^T[D, tN] += gathered^T @ amat   (lane dim = tN -> dense vregs)
        mi_acc[...] += jax.lax.dot_general(
            g, amat, _CONTRACT00, preferred_element_type=jnp.float32)

        @pl.when(ek == n_ek - 1)
        def _mlp_and_store():
            mi_t = mi_acc[...]         # [D, tN]
            x_t = x_tile_ref[...]      # [tN, D]

            def first_linear(w_mi, w_x, b):
                # == concat([mi, x], axis=1) @ W + b, without the lane concat;
                # mi arrives transposed and is consumed by a trans_a dot.
                h_mi = jax.lax.dot_general(mi_t, w_mi[...], _CONTRACT00,
                                           preferred_element_type=jnp.float32)
                h_x = jnp.dot(x_t, w_x[...],
                              preferred_element_type=jnp.float32)
                return h_mi + h_x + b[...]

            if nb_layers >= 2:
                h = first_linear(p[0], p[1], p[2])
                h = jnp.tanh(_layernorm(h, p[3][...], p[4][...]))
                rest = p[5:]
                for i in range(nb_layers - 2):
                    w, b, gm, bt = rest[4 * i:4 * i + 4]
                    h = (jnp.dot(h, w[...], preferred_element_type=jnp.float32)
                         + b[...])
                    h = jnp.tanh(_layernorm(h, gm[...], bt[...]))
                wf, bf = rest[-2], rest[-1]
                out_ref[...] = (jnp.dot(h, wf[...],
                                        preferred_element_type=jnp.float32)
                                + bf[...])
            else:
                out_ref[...] = first_linear(p[0], p[1], p[2])

    return kernel


def node_network(x, e, edge_index, params, nb_layers,
                 *, edge_tile=512, node_tile=256):
    n, d = x.shape
    e_cnt = int(e.shape[0])

    out_dim = params[-1][0].shape[1]
    hidden = params[0][0].shape[1]
    out_pad = _round_up(out_dim, 128)

    if n == 0:
        return jnp.zeros((0, out_dim), jnp.float32)

    # ---- tiling -------------------------------------------------------------
    t_e = min(_round_up(max(e_cnt, 1), 8), edge_tile)
    e_pad = _round_up(max(e_cnt, 1), t_e)
    t_n = min(_round_up(n, 8), node_tile)
    n_pad = _round_up(n, t_n)
    if n_pad // t_n < 2 and n > 8:
        # v7x has two TensorCores: guarantee >=2 tiles on the "parallel" axis.
        t_n = _round_up((n + 1) // 2, 8)
        n_pad = _round_up(n, t_n)

    # ---- hoisted gather (plain XLA), edge weight folded in -------------------
    start = edge_index[0].astype(jnp.int32)
    end = edge_index[1].astype(jnp.int32)
    ew = e.astype(jnp.float32)
    if e_pad != e_cnt:
        pad_e = (0, e_pad - e_cnt)
        start = jnp.pad(start, pad_e)   # pad edges point at node 0 ...
        end = jnp.pad(end, pad_e)
        ew = jnp.pad(ew, pad_e)         # ... but e = 0 neutralizes them

    x32 = x.astype(jnp.float32)
    gathered = jnp.concatenate([ew[:, None] * x32[start],    # scattered to end
                                ew[:, None] * x32[end]],     # scattered to start
                               axis=0)                          # [2*e_pad, D]
    tgt = jnp.concatenate([end, start], axis=0).reshape(-1, 1)  # [2*e_pad, 1]

    x_p = x32 if n_pad == n else jnp.pad(x32, ((0, n_pad - n), (0, 0)))

    # ---- flatten params: split first-layer weight (kills the concat), pad the
    #      final layer's output dim to a lane-dense multiple of 128 ------------
    flat = []
    if nb_layers >= 2:
        w1, b1, g1, bt1 = params[0]
        flat += [w1[:d], w1[d:], b1.reshape(1, -1),
                 g1.reshape(1, -1), bt1.reshape(1, -1)]
        for i in range(1, nb_layers - 1):
            w, b, g, bt = params[i]
            flat += [w, b.reshape(1, -1), g.reshape(1, -1), bt.reshape(1, -1)]
        wf, bf = params[-1]
        flat += [jnp.pad(wf, ((0, 0), (0, out_pad - out_dim))),
                 jnp.pad(bf.reshape(1, -1), ((0, 0), (0, out_pad - out_dim)))]
    else:
        wf, bf = params[0]
        wf_p = jnp.pad(wf, ((0, 0), (0, out_pad - out_dim)))
        flat += [wf_p[:d], wf_p[d:],
                 jnp.pad(bf.reshape(1, -1), ((0, 0), (0, out_pad - out_dim)))]

    grid = (n_pad // t_n, e_pad // t_e)
    n_tiles = grid[0]

    # ---- advisory cost / VMEM hints ------------------------------------------
    lane = lambda c: _round_up(c, 128)
    sub = lambda r: _round_up(r, 8)
    flops = (4 * e_pad * n_pad * d                           # one-hot scatter
             + n_pad * (4 * d * hidden
                        + 2 * hidden * hidden * max(nb_layers - 2, 0)
                        + 2 * hidden * out_pad))
    transcendentals = n_pad * (hidden + 1) * max(nb_layers - 1, 0)
    param_bytes = sum(int(np.prod(w.shape)) * 4 for w in flat)
    bytes_accessed = (n_tiles * 2 * e_pad * (d + 1) * 4      # gathered+tgt per node tile
                      + n_pad * d * 4 + param_bytes + n_pad * out_pad * 4)

    vmem_bytes = (2 * (2 * t_e) * lane(1) * 4                # tgt (double-buffered)
                  + 2 * (2 * t_e) * lane(d) * 4              # gathered
                  + 2 * sub(t_n) * lane(d) * 4               # x tile
                  + 2 * sum(sub(w.shape[0]) * lane(w.shape[1]) * 4 for w in flat)
                  + 2 * sub(t_n) * out_pad * 4               # output tile
                  + sub(d) * lane(t_n) * 4                   # mi^T accumulator
                  + (2 * t_e) * lane(t_n) * 4                # one-hot intermediate
                  + 3 * sub(t_n) * lane(max(hidden, out_pad)) * 4)  # MLP temps
    try:
        cap = int(getattr(pltpu.get_tpu_info(), "vmem_capacity_bytes",
                          64 * 2 ** 20))
    except Exception:                                        # off-TPU etc.
        cap = 64 * 2 ** 20
    vmem_limit = int(min(max(int(1.5 * vmem_bytes), 16 * 2 ** 20),
                         int(0.75 * cap)))

    # ---- specs ----------------------------------------------------------------
    # TODO(synk): the (2tE, 1) int blocks waste lanes in VMEM; move targets to
    #   SMEM scalar prefetch once the one-hot scatter becomes an index scatter.
    tgt_spec = pl.BlockSpec((2 * t_e, 1), lambda nj, ek: (ek, 0))
    gath_spec = pl.BlockSpec((2 * t_e, d), lambda nj, ek: (ek, 0))
    x_spec = pl.BlockSpec((t_n, d), lambda nj, ek: (nj, 0))
    weight_specs = [pl.BlockSpec(w.shape, lambda nj, ek: (0, 0)) for w in flat]

    out = pl.pallas_call(
        _make_kernel(nb_layers),
        out_shape=jax.ShapeDtypeStruct((n_pad, out_pad), jnp.float32),
        grid_spec=pltpu.PrefetchScalarGridSpec(
            num_scalar_prefetch=0,
            grid=grid,
            in_specs=[tgt_spec, gath_spec, x_spec] + weight_specs,
            out_specs=pl.BlockSpec((t_n, out_pad), lambda nj, ek: (nj, 0)),
            scratch_shapes=[pltpu.VMEM((d, t_n), jnp.float32)]),
        compiler_params=pltpu.CompilerParams(
            dimension_semantics=("parallel", "arbitrary"),
            vmem_limit_bytes=vmem_limit),
        cost_estimate=pl.CostEstimate(flops=int(flops),
                                      transcendentals=int(transcendentals),
                                      bytes_accessed=int(bytes_accessed)),
    )(tgt, gathered, x_p, *flat)
    return out[:n, :out_dim]


def reference(x, e, edge_index, params, nb_layers):
    start, end = edge_index
    mi = jax.ops.segment_sum(e[:, None] * x[start], end, num_segments=x.shape[0])
    mi = mi + jax.ops.segment_sum(e[:, None] * x[end], start,
                                  num_segments=x.shape[0])
    h = jnp.concatenate([mi, x], axis=1)
    for i in range(nb_layers - 1):
        W, b, g, bt = params[i]
        h = h @ W + b
        mean = h.mean(-1, keepdims=True)
        var = ((h - mean) ** 2).mean(-1, keepdims=True)
        h = (h - mean) / jnp.sqrt(var + LN_EPS) * g + bt
        h = jnp.tanh(h)
    Wf, bf = params[-1]
    return h @ Wf + bf


def init_params(key, input_dim, output_dim, nb_layers):
    """Deterministic init mimicking PyTorch Linear default (U(-1/sqrt(fan_in)))."""
    sizes = [2 * input_dim] + [output_dim] * nb_layers
    params = []
    for i in range(nb_layers):
        key, kw, kb = jax.random.split(key, 3)
        fan_in = sizes[i]
        bound = 1.0 / np.sqrt(fan_in)
        W = jax.random.uniform(kw, (sizes[i], sizes[i + 1]), jnp.float32,
                               -bound, bound)   # stored [in, out]
        b = jax.random.uniform(kb, (sizes[i + 1],), jnp.float32, -bound, bound)
        if i < nb_layers - 1:
            g = jnp.ones((sizes[i + 1],), jnp.float32)
            bt = jnp.zeros((sizes[i + 1],), jnp.float32)
            params.append((W, b, g, bt))
        else:
            params.append((W, b))
    return params


if __name__ == "__main__":
    # Small synthetic graph: N nodes, E edges, input_dim -> output_dim MLP.
    N, E = 16, 32
    input_dim, output_dim, nb_layers = 8, 32, 3

    key = jax.random.PRNGKey(0)
    kx, ke, ks, kd, kp = jax.random.split(key, 5)
    x = jax.random.normal(kx, (N, input_dim), jnp.float32)
    e = jax.random.uniform(ke, (E,), jnp.float32)
    start = jax.random.randint(ks, (E,), 0, N, jnp.int32)
    end = jax.random.randint(kd, (E,), 0, N, jnp.int32)
    edge_index = jnp.stack([start, end], axis=0)  # [2, E]

    params = init_params(kp, input_dim, output_dim, nb_layers)

    out = node_network(x, e, edge_index, params, nb_layers)
    out = jax.block_until_ready(out)

    ref = reference(x, e, edge_index, params, nb_layers)
    np.testing.assert_allclose(np.asarray(out), np.asarray(ref),
                               rtol=1e-4, atol=1e-4)
    print("KERNEL_OK")
</pallas_src>

<mosaic_0001>
module attributes {stable_mosaic.version = 11 : i64} {
  func.func @kernel(%arg0: i32, %arg1: i32, %arg2: memref<64x1xi32, #tpu.memory_space<vmem>>, %arg3: memref<64x8xf32, #tpu.memory_space<vmem>>, %arg4: memref<8x8xf32, #tpu.memory_space<vmem>>, %arg5: memref<8x32xf32, #tpu.memory_space<vmem>>, %arg6: memref<8x32xf32, #tpu.memory_space<vmem>>, %arg7: memref<1x32xf32, #tpu.memory_space<vmem>>, %arg8: memref<1x32xf32, #tpu.memory_space<vmem>>, %arg9: memref<1x32xf32, #tpu.memory_space<vmem>>, %arg10: memref<32x32xf32, #tpu.memory_space<vmem>>, %arg11: memref<1x32xf32, #tpu.memory_space<vmem>>, %arg12: memref<1x32xf32, #tpu.memory_space<vmem>>, %arg13: memref<1x32xf32, #tpu.memory_space<vmem>>, %arg14: memref<32x128xf32, #tpu.memory_space<vmem>>, %arg15: memref<1x128xf32, #tpu.memory_space<vmem>>, %arg16: memref<8x128xf32, #tpu.memory_space<vmem>>, %arg17: memref<8x8xf32, #tpu.memory_space<vmem>>) attributes {dimension_semantics = [#tpu.dimension_semantics<parallel>, #tpu.dimension_semantics<arbitrary>], iteration_bounds = array<i64: 2, 1>, scalar_prefetch = 0 : i64, scratch_operands = 1 : i64, tpu.core_type = #tpu.core_type<tc>, window_params = [{transform_indices = @transform_0, window_bounds = array<i64: 64, 1>}, {transform_indices = @transform_1, window_bounds = array<i64: 64, 8>}, {transform_indices = @transform_2, window_bounds = array<i64: 8, 8>}, {pipeline_mode = #tpu.pipeline_mode<synchronous>, transform_indices = @transform_3, window_bounds = array<i64: 8, 32>}, {pipeline_mode = #tpu.pipeline_mode<synchronous>, transform_indices = @transform_4, window_bounds = array<i64: 8, 32>}, {pipeline_mode = #tpu.pipeline_mode<synchronous>, transform_indices = @transform_5, window_bounds = array<i64: 1, 32>}, {pipeline_mode = #tpu.pipeline_mode<synchronous>, transform_indices = @transform_6, window_bounds = array<i64: 1, 32>}, {pipeline_mode = #tpu.pipeline_mode<synchronous>, transform_indices = @transform_7, window_bounds = array<i64: 1, 32>}, {pipeline_mode = #tpu.pipeline_mode<synchronous>, transform_indices = @transform_8, window_bounds = array<i64: 32, 32>}, {pipeline_mode = #tpu.pipeline_mode<synchronous>, transform_indices = @transform_9, window_bounds = array<i64: 1, 32>}, {pipeline_mode = #tpu.pipeline_mode<synchronous>, transform_indices = @transform_10, window_bounds = array<i64: 1, 32>}, {pipeline_mode = #tpu.pipeline_mode<synchronous>, transform_indices = @transform_11, window_bounds = array<i64: 1, 32>}, {pipeline_mode = #tpu.pipeline_mode<synchronous>, transform_indices = @transform_12, window_bounds = array<i64: 32, 128>}, {pipeline_mode = #tpu.pipeline_mode<synchronous>, transform_indices = @transform_13, window_bounds = array<i64: 1, 128>}, {transform_indices = @transform_14, window_bounds = array<i64: 8, 128>}]} {
    %c0_i32 = arith.constant 0 : i32
    %0 = arith.cmpi eq, %arg1, %c0_i32 : i32
    %1 = arith.extui %0 : i1 to i32
    %c0_i32_0 = arith.constant 0 : i32
    %2 = arith.cmpi ne, %1, %c0_i32_0 : i32
    scf.if %2 {
      %cst_10 = arith.constant 0.000000e+00 : f32
      %20 = vector.broadcast %cst_10 : f32 to vector<8x8xf32>
      %c0_11 = arith.constant 0 : index
      %c0_12 = arith.constant 0 : index
      %21 = vector.load %arg17[%c0_11, %c0_12] : memref<8x8xf32, #tpu.memory_space<vmem>>, vector<8x8xf32>
      tpu.vector_store %arg17[%c0_11, %c0_12], %20 {strides = array<i32>} : memref<8x8xf32, #tpu.memory_space<vmem>>, vector<8x8xf32>,
    } else {
    }
    %c0 = arith.constant 0 : index
    %c0_1 = arith.constant 0 : index
    %3 = vector.load %arg3[%c0, %c0_1] : memref<64x8xf32, #tpu.memory_space<vmem>>, vector<64x8xf32>
    %c0_2 = arith.constant 0 : index
    %c0_3 = arith.constant 0 : index
    %4 = vector.load %arg2[%c0_2, %c0_3] : memref<64x1xi32, #tpu.memory_space<vmem>>, vector<64x1xi32>
    %c8_i32 = arith.constant 8 : i32
    %5 = arith.muli %arg0, %c8_i32 : i32
    %6 = vector.broadcast %5 : i32 to vector<64x1xi32>
    %7 = arith.subi %4, %6 : vector<64x1xi32>
    %8 = tpu.iota {dimensions = array<i32: 1>} : vector<64x8xi32>
    %9 = vector.broadcast %7 : vector<64x1xi32> to vector<64x8xi32>
    %10 = arith.cmpi eq, %8, %9 : vector<64x8xi32>
    %11 = arith.extui %10 : vector<64x8xi1> to vector<64x8xi32>
    %12 = arith.sitofp %11 : vector<64x8xi32> to vector<64x8xf32>
    %c0_4 = arith.constant 0 : index
    %c0_5 = arith.constant 0 : index
    %13 = vector.load %arg17[%c0_4, %c0_5] : memref<8x8xf32, #tpu.memory_space<vmem>>, vector<8x8xf32>
    %cst = arith.constant dense<0.000000e+00> : vector<8x8xf32>
    %14 = tpu.matmul %3, %12, %cst {dimension_numbers = #tpu.dot_dimension_numbers<[0], [0], [1], [1], [0, 1, 1, 1], [], []>} : vector<64x8xf32>, vector<64x8xf32>, vector<8x8xf32> -> vector<8x8xf32>
    %15 = arith.addf %13, %14 : vector<8x8xf32>
    %c0_6 = arith.constant 0 : index
    %c0_7 = arith.constant 0 : index
    %16 = vector.load %arg17[%c0_6, %c0_7] : memref<8x8xf32, #tpu.memory_space<vmem>>, vector<8x8xf32>
    tpu.vector_store %arg17[%c0_6, %c0_7], %15 {strides = array<i32>} : memref<8x8xf32, #tpu.memory_space<vmem>>, vector<8x8xf32>,
    %c0_i32_8 = arith.constant 0 : i32
    %17 = arith.cmpi eq, %arg1, %c0_i32_8 : i32
    %18 = arith.extui %17 : i1 to i32
    %c0_i32_9 = arith.constant 0 : i32
    %19 = arith.cmpi ne, %18, %c0_i32_9 : i32
    scf.if %19 {
      %c0_10 = arith.constant 0 : index
      %c0_11 = arith.constant 0 : index
      %20 = vector.load %arg17[%c0_10, %c0_11] : memref<8x8xf32, #tpu.memory_space<vmem>>, vector<8x8xf32>
      %c0_12 = arith.constant 0 : index
      %c0_13 = arith.constant 0 : index
      %21 = vector.load %arg4[%c0_12, %c0_13] : memref<8x8xf32, #tpu.memory_space<vmem>>, vector<8x8xf32>
      %c0_14 = arith.constant 0 : index
      %c0_15 = arith.constant 0 : index
      %22 = vector.load %arg5[%c0_14, %c0_15] : memref<8x32xf32, #tpu.memory_space<vmem>>, vector<8x32xf32>
      %cst_16 = arith.constant dense<0.000000e+00> : vector<8x32xf32>
      %23 = tpu.matmul %20, %22, %cst_16 {dimension_numbers = #tpu.dot_dimension_numbers<[0], [0], [1], [1], [0, 1, 1, 1], [], []>} : vector<8x8xf32>, vector<8x32xf32>, vector<8x32xf32> -> vector<8x32xf32>
      %c0_17 = arith.constant 0 : index
      %c0_18 = arith.constant 0 : index
      %24 = vector.load %arg6[%c0_17, %c0_18] : memref<8x32xf32, #tpu.memory_space<vmem>>, vector<8x32xf32>
      %cst_19 = arith.constant dense<0.000000e+00> : vector<8x32xf32>
      %25 = tpu.matmul %21, %24, %cst_19 {dimension_numbers = #tpu.dot_dimension_numbers<[1], [0], [0], [1], [0, 0, 1, 1], [], []>} : vector<8x8xf32>, vector<8x32xf32>, vector<8x32xf32> -> vector<8x32xf32>
      %26 = arith.addf %23, %25 : vector<8x32xf32>
      %c0_20 = arith.constant 0 : index
      %c0_21 = arith.constant 0 : index
      %27 = vector.load %arg7[%c0_20, %c0_21] : memref<1x32xf32, #tpu.memory_space<vmem>>, vector<1x32xf32>
      %28 = vector.broadcast %27 : vector<1x32xf32> to vector<8x32xf32>
      %29 = arith.addf %26, %28 : vector<8x32xf32>
      %c0_22 = arith.constant 0 : index
      %c0_23 = arith.constant 0 : index
      %30 = vector.load %arg8[%c0_22, %c0_23] : memref<1x32xf32, #tpu.memory_space<vmem>>, vector<1x32xf32>
      %c0_24 = arith.constant 0 : index
      %c0_25 = arith.constant 0 : index
      %31 = vector.load %arg9[%c0_24, %c0_25] : memref<1x32xf32, #tpu.memory_space<vmem>>, vector<1x32xf32>
      %cst_26 = arith.constant dense<0.000000e+00> : vector<8xf32>
      %32 = vector.multi_reduction <add>, %29, %cst_26 [1] : vector<8x32xf32> to vector<8xf32>
      %33 = vector.shape_cast %32 : vector<8xf32> to vector<8x1xf32>
      %cst_27 = arith.constant 3.200000e+01 : f32
      %34 = vector.broadcast %cst_27 : f32 to vector<8x1xf32>
      %35 = arith.divf %33, %34 : vector<8x1xf32>
      %36 = vector.broadcast %35 : vector<8x1xf32> to vector<8x32xf32>
      %37 = arith.subf %29, %36 : vector<8x32xf32>
      %38 = arith.mulf %37, %37 : vector<8x32xf32>
      %cst_28 = arith.constant dense<0.000000e+00> : vector<8xf32>
      %39 = vector.multi_reduction <add>, %38, %cst_28 [1] : vector<8x32xf32> to vector<8xf32>
      %40 = vector.shape_cast %39 : vector<8xf32> to vector<8x1xf32>
      %cst_29 = arith.constant 3.200000e+01 : f32
      %41 = vector.broadcast %cst_29 : f32 to vector<8x1xf32>
      %42 = arith.divf %40, %41 : vector<8x1xf32>
      %cst_30 = arith.constant 9.99999974E-6 : f32
      %43 = vector.broadcast %cst_30 : f32 to vector<8x1xf32>
      %44 = arith.addf %42, %43 : vector<8x1xf32>
      %45 = math.rsqrt %44 : vector<8x1xf32>
      %46 = vector.broadcast %45 : vector<8x1xf32> to vector<8x32xf32>
      %47 = arith.mulf %37, %46 : vector<8x32xf32>
      %48 = vector.broadcast %30 : vector<1x32xf32> to vector<8x32xf32>
      %49 = arith.mulf %47, %48 : vector<8x32xf32>
      %50 = vector.broadcast %31 : vector<1x32xf32> to vector<8x32xf32>
      %51 = arith.addf %49, %50 : vector<8x32xf32>
      %52 = math.tanh %51 : vector<8x32xf32>
      %c0_31 = arith.constant 0 : index
      %c0_32 = arith.constant 0 : index
      %53 = vector.load %arg10[%c0_31, %c0_32] : memref<32x32xf32, #tpu.memory_space<vmem>>, vector<32x32xf32>
      %cst_33 = arith.constant dense<0.000000e+00> : vector<8x32xf32>
      %54 = tpu.matmul %52, %53, %cst_33 {dimension_numbers = #tpu.dot_dimension_numbers<[1], [0], [0], [1], [0, 0, 1, 1], [], []>} : vector<8x32xf32>, vector<32x32xf32>, vector<8x32xf32> -> vector<8x32xf32>
      %c0_34 = arith.constant 0 : index
      %c0_35 = arith.constant 0 : index
      %55 = vector.load %arg11[%c0_34, %c0_35] : memref<1x32xf32, #tpu.memory_space<vmem>>, vector<1x32xf32>
      %56 = vector.broadcast %55 : vector<1x32xf32> to vector<8x32xf32>
      %57 = arith.addf %54, %56 : vector<8x32xf32>
      %c0_36 = arith.constant 0 : index
      %c0_37 = arith.constant 0 : index
      %58 = vector.load %arg12[%c0_36, %c0_37] : memref<1x32xf32, #tpu.memory_space<vmem>>, vector<1x32xf32>
      %c0_38 = arith.constant 0 : index
      %c0_39 = arith.constant 0 : index
      %59 = vector.load %arg13[%c0_38, %c0_39] : memref<1x32xf32, #tpu.memory_space<vmem>>, vector<1x32xf32>
      %cst_40 = arith.constant dense<0.000000e+00> : vector<8xf32>
      %60 = vector.multi_reduction <add>, %57, %cst_40 [1] : vector<8x32xf32> to vector<8xf32>
      %61 = vector.shape_cast %60 : vector<8xf32> to vector<8x1xf32>
      %cst_41 = arith.constant 3.200000e+01 : f32
      %62 = vector.broadcast %cst_41 : f32 to vector<8x1xf32>
      %63 = arith.divf %61, %62 : vector<8x1xf32>
      %64 = vector.broadcast %63 : vector<8x1xf32> to vector<8x32xf32>
      %65 = arith.subf %57, %64 : vector<8x32xf32>
      %66 = arith.mulf %65, %65 : vector<8x32xf32>
      %cst_42 = arith.constant dense<0.000000e+00> : vector<8xf32>
      %67 = vector.multi_reduction <add>, %66, %cst_42 [1] : vector<8x32xf32> to vector<8xf32>
      %68 = vector.shape_cast %67 : vector<8xf32> to vector<8x1xf32>
      %cst_43 = arith.constant 3.200000e+01 : f32
      %69 = vector.broadcast %cst_43 : f32 to vector<8x1xf32>
      %70 = arith.divf %68, %69 : vector<8x1xf32>
      %cst_44 = arith.constant 9.99999974E-6 : f32
      %71 = vector.broadcast %cst_44 : f32 to vector<8x1xf32>
      %72 = arith.addf %70, %71 : vector<8x1xf32>
      %73 = math.rsqrt %72 : vector<8x1xf32>
      %74 = vector.broadcast %73 : vector<8x1xf32> to vector<8x32xf32>
      %75 = arith.mulf %65, %74 : vector<8x32xf32>
      %76 = vector.broadcast %58 : vector<1x32xf32> to vector<8x32xf32>
      %77 = arith.mulf %75, %76 : vector<8x32xf32>
      %78 = vector.broadcast %59 : vector<1x32xf32> to vector<8x32xf32>
      %79 = arith.addf %77, %78 : vector<8x32xf32>
      %80 = math.tanh %79 : vector<8x32xf32>
      %c0_45 = arith.constant 0 : index
      %c0_46 = arith.constant 0 : index
      %81 = vector.load %arg14[%c0_45, %c0_46] : memref<32x128xf32, #tpu.memory_space<vmem>>, vector<32x128xf32>
      %cst_47 = arith.constant dense<0.000000e+00> : vector<8x128xf32>
      %82 = tpu.matmul %80, %81, %cst_47 {dimension_numbers = #tpu.dot_dimension_numbers<[1], [0], [0], [1], [0, 0, 1, 1], [], []>} : vector<8x32xf32>, vector<32x128xf32>, vector<8x128xf32> -> vector<8x128xf32>
      %c0_48 = arith.constant 0 : index
      %c0_49 = arith.constant 0 : index
      %83 = vector.load %arg15[%c0_48, %c0_49] : memref<1x128xf32, #tpu.memory_space<vmem>>, vector<1x128xf32>
      %84 = vector.broadcast %83 : vector<1x128xf32> to vector<8x128xf32>
      %85 = arith.addf %82, %84 : vector<8x128xf32>
      %c0_50 = arith.constant 0 : index
      %c0_51 = arith.constant 0 : index
      %86 = vector.load %arg16[%c0_50, %c0_51] : memref<8x128xf32, #tpu.memory_space<vmem>>, vector<8x128xf32>
      tpu.vector_store %arg16[%c0_50, %c0_51], %85 {strides = array<i32>} : memref<8x128xf32, #tpu.memory_space<vmem>>, vector<8x128xf32>,
    } else {
    }
    return
  }
  func.func @transform_0(%arg0: i32, %arg1: i32) -> (i32, i32) {
    %c0_i32 = arith.constant 0 : i32
    %c0_i32_0 = arith.constant 0 : i32
    return %arg1, %c0_i32 : i32, i32
  }
  func.func @transform_1(%arg0: i32, %arg1: i32) -> (i32, i32) {
    %c0_i32 = arith.constant 0 : i32
    %c0_i32_0 = arith.constant 0 : i32
    return %arg1, %c0_i32 : i32, i32
  }
  func.func @transform_2(%arg0: i32, %arg1: i32) -> (i32, i32) {
    %c0_i32 = arith.constant 0 : i32
    %c0_i32_0 = arith.constant 0 : i32
    return %arg0, %c0_i32 : i32, i32
  }
  func.func @transform_3(%arg0: i32, %arg1: i32) -> (i32, i32) {
    %c0_i32 = arith.constant 0 : i32
    %c0_i32_0 = arith.constant 0 : i32
    %c0_i32_1 = arith.constant 0 : i32
    return %c0_i32, %c0_i32_0 : i32, i32
  }
  func.func @transform_4(%arg0: i32, %arg1: i32) -> (i32, i32) {
    %c0_i32 = arith.constant 0 : i32
    %c0_i32_0 = arith.constant 0 : i32
    %c0_i32_1 = arith.constant 0 : i32
    return %c0_i32, %c0_i32_0 : i32, i32
  }
  func.func @transform_5(%arg0: i32, %arg1: i32) -> (i32, i32) {
    %c0_i32 = arith.constant 0 : i32
    %c0_i32_0 = arith.constant 0 : i32
    %c0_i32_1 = arith.constant 0 : i32
    return %c0_i32, %c0_i32_0 : i32, i32
  }
  func.func @transform_6(%arg0: i32, %arg1: i32) -> (i32, i32) {
    %c0_i32 = arith.constant 0 : i32
    %c0_i32_0 = arith.constant 0 : i32
    %c0_i32_1 = arith.constant 0 : i32
    return %c0_i32, %c0_i32_0 : i32, i32
  }
  func.func @transform_7(%arg0: i32, %arg1: i32) -> (i32, i32) {
    %c0_i32 = arith.constant 0 : i32
    %c0_i32_0 = arith.constant 0 : i32
    %c0_i32_1 = arith.constant 0 : i32
    return %c0_i32, %c0_i32_0 : i32, i32
  }
  func.func @transform_8(%arg0: i32, %arg1: i32) -> (i32, i32) {
    %c0_i32 = arith.constant 0 : i32
    %c0_i32_0 = arith.constant 0 : i32
    %c0_i32_1 = arith.constant 0 : i32
    return %c0_i32, %c0_i32_0 : i32, i32
  }
  func.func @transform_9(%arg0: i32, %arg1: i32) -> (i32, i32) {
    %c0_i32 = arith.constant 0 : i32
    %c0_i32_0 = arith.constant 0 : i32
    %c0_i32_1 = arith.constant 0 : i32
    return %c0_i32, %c0_i32_0 : i32, i32
  }
  func.func @transform_10(%arg0: i32, %arg1: i32) -> (i32, i32) {
    %c0_i32 = arith.constant 0 : i32
    %c0_i32_0 = arith.constant 0 : i32
    %c0_i32_1 = arith.constant 0 : i32
    return %c0_i32, %c0_i32_0 : i32, i32
  }
  func.func @transform_11(%arg0: i32, %arg1: i32) -> (i32, i32) {
    %c0_i32 = arith.constant 0 : i32
    %c0_i32_0 = arith.constant 0 : i32
    %c0_i32_1 = arith.constant 0 : i32
    return %c0_i32, %c0_i32_0 : i32, i32
  }
  func.func @transform_12(%arg0: i32, %arg1: i32) -> (i32, i32) {
    %c0_i32 = arith.constant 0 : i32
    %c0_i32_0 = arith.constant 0 : i32
    %c0_i32_1 = arith.constant 0 : i32
    return %c0_i32, %c0_i32_0 : i32, i32
  }
  func.func @transform_13(%arg0: i32, %arg1: i32) -> (i32, i32) {
    %c0_i32 = arith.constant 0 : i32
    %c0_i32_0 = arith.constant 0 : i32
    %c0_i32_1 = arith.constant 0 : i32
    return %c0_i32, %c0_i32_0 : i32, i32
  }
  func.func @transform_14(%arg0: i32, %arg1: i32) -> (i32, i32) {
    %c0_i32 = arith.constant 0 : i32
    %c0_i32_0 = arith.constant 0 : i32
    return %arg0, %c0_i32 : i32, i32
  }
}

</mosaic_0001>

<llo_original>
// kernel: tpu_custom_call.1
$region0: #{tpu_custom_call.1}
  #allocation0 [shape = 'u32[]', space=smem, size = 0x4, offset = 0x4, fixed_abs, tag = 'smem constant byte address 0x4 - core index']
  #allocation1 [shape = 'u32[144,128]{1,0:T(1,128)}', space=vmem, size = 0x12000, scoped, tag = 'internal scratch']
  #allocation2 [shape = 'f32[8,8]{1,0:T(8,128)}', space=vmem, size = 0x1000, scoped, tag = 'scratch operand']
  %s0 = inlined_call_operand.vmem [shape: s32[64,1], index: 0, kind: input, shape index: {}]
  %s1 = inlined_call_operand.vmem [shape: f32[64,8], index: 1, kind: input, shape index: {}]
  %s2 = inlined_call_operand.vmem [shape: f32[16,8], index: 2, kind: input, shape index: {}]
  %s3 = inlined_call_operand.vmem [shape: f32[8,32], index: 3, kind: input, shape index: {}]
  %s4 = inlined_call_operand.vmem [shape: f32[8,32], index: 4, kind: input, shape index: {}]
  %s5 = inlined_call_operand.vmem [shape: f32[1,32], index: 5, kind: input, shape index: {}]
  %s6 = inlined_call_operand.vmem [shape: f32[1,32], index: 6, kind: input, shape index: {}]
  %s7 = inlined_call_operand.vmem [shape: f32[1,32], index: 7, kind: input, shape index: {}]
  %s8 = inlined_call_operand.vmem [shape: f32[32,32], index: 8, kind: input, shape index: {}]
  %s9 = inlined_call_operand.vmem [shape: f32[1,32], index: 9, kind: input, shape index: {}]
  %s10 = inlined_call_operand.vmem [shape: f32[1,32], index: 10, kind: input, shape index: {}]
  %s11 = inlined_call_operand.vmem [shape: f32[1,32], index: 11, kind: input, shape index: {}]
  %s12 = inlined_call_operand.vmem [shape: f32[32,128], index: 12, kind: input, shape index: {}]
  %s13 = inlined_call_operand.vmem [shape: f32[1,128], index: 13, kind: input, shape index: {}]
  %s14 = inlined_call_operand.hbm [shape: f32[16,128], index: 14, kind: output, shape index: {}]
  %s15 = sld [smem:[#allocation0]]
  $region97: #{tpu_custom_call.1} parent=0
    _
  %s17 = ssub.s32 1, %s15
  %s18 = scalar_select 0, %s17, %s15
  $region1: #{tpu_custom_call.1} parent=0
    #allocation3 [shape = 'u8[8192]{0}', space=vmem, size = 0x2000, scoped, tag = 'output window, operand 0']
    #allocation4 [shape = 's32[2]{0}', space=sflag, size = 0x8, scoped, tag = 'scoped memory for tpu_custom_call.1']
    %19 = vsyncpa [#allocation4], 0
    %s20 = scalar_lea.sflag [#allocation4], 1
    %21 = vsyncpa %s20, 0
    loop: start=0, step=1, limit=4
    $region2: #{tpu_custom_call.1} parent=1 // loop_pre_header
      _
    $region3: #{tpu_custom_call.1} parent=1 // loop_header
      %s23 = sphi 0, %s27
      %p24 = scmp.ge.s32.totalorder %s23, 4
      %s30 = sphi 0, %s42
      %s31 = sphi 0, %s38
      %s32 = sphi 0, %s30
      %s33 = sphi 0, %s31
      %s34 = sphi 0, %s32
      %s35 = sphi 0, %s33
      %s45 = sphi 0, %s47
      %s48 = sphi 0, %s45
      %s49 = sphi 0, %s48
      %s65 = sphi 0, %s49
      %s71 = sphi 0, %s73
      %s74 = sphi 0, %s71
      %s75 = sphi 0, %s74
      %s91 = sphi 0, %s75
      %s97 = sphi 0, %s99
      %s100 = sphi 0, %s97
      %s101 = sphi 0, %s100
      %s117 = sphi 0, %s101
      %s121 = sphi 0, %s121
      %s123 = sphi 0, %s121
      %s124 = sphi 0, %s123
      %s138 = sphi 0, %s124
      %s142 = sphi 0, %s142
      %s144 = sphi 0, %s142
      %s145 = sphi 0, %s144
      %s159 = sphi 0, %s145
      %s163 = sphi 0, %s163
      %s165 = sphi 0, %s163
      %s166 = sphi 0, %s165
      %s180 = sphi 0, %s166
      %s184 = sphi 0, %s184
      %s186 = sphi 0, %s184
      %s187 = sphi 0, %s186
      %s201 = sphi 0, %s187
      %s205 = sphi 0, %s205
      %s207 = sphi 0, %s205
      %s208 = sphi 0, %s207
      %s222 = sphi 0, %s208
      %s226 = sphi 0, %s226
      %s228 = sphi 0, %s226
      %s229 = sphi 0, %s228
      %s243 = sphi 0, %s229
      %s247 = sphi 0, %s247
      %s249 = sphi 0, %s247
      %s250 = sphi 0, %s249
      %s264 = sphi 0, %s250
      %s268 = sphi 0, %s268
      %s270 = sphi 0, %s268
      %s271 = sphi 0, %s270
      %s285 = sphi 0, %s271
      %s289 = sphi 0, %s289
      %s291 = sphi 0, %s289
      %s292 = sphi 0, %s291
      %s306 = sphi 0, %s292
      %s310 = sphi 0, %s310
      %s312 = sphi 0, %s310
      %s313 = sphi 0, %s312
      %s327 = sphi 0, %s313
      %s331 = sphi 0, %s331
      %s333 = sphi 0, %s331
      %s334 = sphi 0, %s333
      %s348 = sphi 0, %s334
      %s354 = sphi 0, %s356
      %s357 = sphi 0, %s354
      %s358 = sphi 0, %s357
      %s374 = sphi 0, %s358
    $region4: #{tpu_custom_call.1} parent=1 // loop_header_branch
      %26 = sbr.rel (%p24) target = $region8
    $region5: #{tpu_custom_call.1} parent=1 // loop_body
      %s28 = ssub.s32 %s23, 1
      %s29 = ssub.s32 %s23, 2
      %s36 = sadd.s32 1, %s31
      %p37 = scmp.ge.s32.totalorder %s36, 1
      %s38 = scalar_select %p37, 0, %s36
      %s39 = sadd.s32 1, %s30
      %s40 = scalar_select %p37, %s39, %s30
      %p41 = scmp.ge.s32.totalorder %s40, 2
      %s42 = scalar_select %p41, 0, %s40
      %s43 = ssub.s32 %s31, %s38
      %p44 = scmp.eq.s32.totalorder %s43, 0
      %s46 = sadd.s32 %s45, 1
      %s47 = scalar_select %p44, %s45, %s46
      %p50 = pneg %p44
      %p51 = scmp.eq.s32.totalorder %s23, 1
      %p52 = por %p50, %p51
      %p53 = scmp.ne.s32.totalorder %s45, %s48
      %p54 = scmp.eq.s32.totalorder %s23, 0
      %p55 = por %p53, %p54
      %p56 = scmp.ne.s32.totalorder %s45, %s48
      %p57 = scmp.eq.s32.totalorder %s28, 1
      %p58 = por %p56, %p57
      %p59 = scmp.ne.s32.totalorder %s48, %s49
      %p60 = scmp.eq.s32.totalorder %s28, 0
      %p61 = por %p59, %p60
      %p62 = scmp.ne.s32.totalorder %s48, %s49
      %p63 = scmp.eq.s32.totalorder %s29, 1
      %p64 = por %p62, %p63
      %p66 = scmp.ne.s32.totalorder %s49, %s65
      %p67 = scmp.eq.s32.totalorder %s29, 0
      %p68 = por %p66, %p67
      %s69 = ssub.s32 %s31, %s38
      %p70 = scmp.eq.s32.totalorder %s69, 0
      %s72 = sadd.s32 %s71, 1
      %s73 = scalar_select %p70, %s71, %s72
      %p76 = pneg %p70
      %p77 = scmp.eq.s32.totalorder %s23, 1
      %p78 = por %p76, %p77
      %p79 = scmp.ne.s32.totalorder %s71, %s74
      %p80 = scmp.eq.s32.totalorder %s23, 0
      %p81 = por %p79, %p80
      %p82 = scmp.ne.s32.totalorder %s71, %s74
      %p83 = scmp.eq.s32.totalorder %s28, 1
      %p84 = por %p82, %p83
      %p85 = scmp.ne.s32.totalorder %s74, %s75
      %p86 = scmp.eq.s32.totalorder %s28, 0
      %p87 = por %p85, %p86
      %p88 = scmp.ne.s32.totalorder %s74, %s75
      %p89 = scmp.eq.s32.totalorder %s29, 1
      %p90 = por %p88, %p89
      %p92 = scmp.ne.s32.totalorder %s75, %s91
      %p93 = scmp.eq.s32.totalorder %s29, 0
      %p94 = por %p92, %p93
      %s95 = ssub.s32 %s30, %s42
      %p96 = scmp.eq.s32.totalorder %s95, 0
      %s98 = sadd.s32 %s97, 1
      %s99 = scalar_select %p96, %s97, %s98
      %p102 = pneg %p96
      %p103 = scmp.eq.s32.totalorder %s23, 1
      %p104 = por %p102, %p103
      %p105 = scmp.ne.s32.totalorder %s97, %s100
      %p106 = scmp.eq.s32.totalorder %s23, 0
      %p107 = por %p105, %p106
      %p108 = scmp.ne.s32.totalorder %s97, %s100
      %p109 = scmp.eq.s32.totalorder %s28, 1
      %p110 = por %p108, %p109
      %p111 = scmp.ne.s32.totalorder %s100, %s101
      %p112 = scmp.eq.s32.totalorder %s28, 0
      %p113 = por %p111, %p112
      %p114 = scmp.ne.s32.totalorder %s100, %s101
      %p115 = scmp.eq.s32.totalorder %s29, 1
      %p116 = por %p114, %p115
      %p118 = scmp.ne.s32.totalorder %s101, %s117
      %p119 = scmp.eq.s32.totalorder %s29, 0
      %p120 = por %p118, %p119
      %s122 = sadd.s32 %s121, 1
      %p125 = scmp.eq.s32.totalorder %s23, 1
      %p126 = scmp.ne.s32.totalorder %s121, %s123
      %p127 = scmp.eq.s32.totalorder %s23, 0
      %p128 = por %p126, %p127
      %p129 = scmp.ne.s32.totalorder %s121, %s123
      %p130 = scmp.eq.s32.totalorder %s28, 1
      %p131 = por %p129, %p130
      %p132 = scmp.ne.s32.totalorder %s123, %s124
      %p133 = scmp.eq.s32.totalorder %s28, 0
      %p134 = por %p132, %p133
      %p135 = scmp.ne.s32.totalorder %s123, %s124
      %p136 = scmp.eq.s32.totalorder %s29, 1
      %p137 = por %p135, %p136
      %p139 = scmp.ne.s32.totalorder %s124, %s138
      %p140 = scmp.eq.s32.totalorder %s29, 0
      %p141 = por %p139, %p140
      %s143 = sadd.s32 %s142, 1
      %p146 = scmp.eq.s32.totalorder %s23, 1
      %p147 = scmp.ne.s32.totalorder %s142, %s144
      %p148 = scmp.eq.s32.totalorder %s23, 0
      %p149 = por %p147, %p148
      %p150 = scmp.ne.s32.totalorder %s142, %s144
      %p151 = scmp.eq.s32.totalorder %s28, 1
      %p152 = por %p150, %p151
      %p153 = scmp.ne.s32.totalorder %s144, %s145
      %p154 = scmp.eq.s32.totalorder %s28, 0
      %p155 = por %p153, %p154
      %p156 = scmp.ne.s32.totalorder %s144, %s145
      %p157 = scmp.eq.s32.totalorder %s29, 1
      %p158 = por %p156, %p157
      %p160 = scmp.ne.s32.totalorder %s145, %s159
      %p161 = scmp.eq.s32.totalorder %s29, 0
      %p162 = por %p160, %p161
      %s164 = sadd.s32 %s163, 1
      %p167 = scmp.eq.s32.totalorder %s23, 1
      %p168 = scmp.ne.s32.totalorder %s163, %s165
      %p169 = scmp.eq.s32.totalorder %s23, 0
      %p170 = por %p168, %p169
      %p171 = scmp.ne.s32.totalorder %s163, %s165
      %p172 = scmp.eq.s32.totalorder %s28, 1
      %p173 = por %p171, %p172
      %p174 = scmp.ne.s32.totalorder %s165, %s166
      %p175 = scmp.eq.s32.totalorder %s28, 0
      %p176 = por %p174, %p175
      %p177 = scmp.ne.s32.totalorder %s165, %s166
      %p178 = scmp.eq.s32.totalorder %s29, 1
      %p179 = por %p177, %p178
      %p181 = scmp.ne.s32.totalorder %s166, %s180
      %p182 = scmp.eq.s32.totalorder %s29, 0
      %p183 = por %p181, %p182
      %s185 = sadd.s32 %s184, 1
      %p188 = scmp.eq.s32.totalorder %s23, 1
      %p189 = scmp.ne.s32.totalorder %s184, %s186
      %p190 = scmp.eq.s32.totalorder %s23, 0
      %p191 = por %p189, %p190
      %p192 = scmp.ne.s32.totalorder %s184, %s186
      %p193 = scmp.eq.s32.totalorder %s28, 1
      %p194 = por %p192, %p193
      %p195 = scmp.ne.s32.totalorder %s186, %s187
      %p196 = scmp.eq.s32.totalorder %s28, 0
      %p197 = por %p195, %p196
      %p198 = scmp.ne.s32.totalorder %s186, %s187
      %p199 = scmp.eq.s32.totalorder %s29, 1
      %p200 = por %p198, %p199
      %p202 = scmp.ne.s32.totalorder %s187, %s201
      %p203 = scmp.eq.s32.totalorder %s29, 0
      %p204 = por %p202, %p203
      %s206 = sadd.s32 %s205, 1
      %p209 = scmp.eq.s32.totalorder %s23, 1
      %p210 = scmp.ne.s32.totalorder %s205, %s207
      %p211 = scmp.eq.s32.totalorder %s23, 0
      %p212 = por %p210, %p211
      %p213 = scmp.ne.s32.totalorder %s205, %s207
      %p214 = scmp.eq.s32.totalorder %s28, 1
      %p215 = por %p213, %p214
      %p216 = scmp.ne.s32.totalorder %s207, %s208
      %p217 = scmp.eq.s32.totalorder %s28, 0
      %p218 = por %p216, %p217
      %p219 = scmp.ne.s32.totalorder %s207, %s208
      %p220 = scmp.eq.s32.totalorder %s29, 1
      %p221 = por %p219, %p220
      %p223 = scmp.ne.s32.totalorder %s208, %s222
      %p224 = scmp.eq.s32.totalorder %s29, 0
      %p225 = por %p223, %p224
      %s227 = sadd.s32 %s226, 1
      %p230 = scmp.eq.s32.totalorder %s23, 1
      %p231 = scmp.ne.s32.totalorder %s226, %s228
      %p232 = scmp.eq.s32.totalorder %s23, 0
      %p233 = por %p231, %p232
      %p234 = scmp.ne.s32.totalorder %s226, %s228
      %p235 = scmp.eq.s32.totalorder %s28, 1
      %p236 = por %p234, %p235
      %p237 = scmp.ne.s32.totalorder %s228, %s229
      %p238 = scmp.eq.s32.totalorder %s28, 0
      %p239 = por %p237, %p238
      %p240 = scmp.ne.s32.totalorder %s228, %s229
      %p241 = scmp.eq.s32.totalorder %s29, 1
      %p242 = por %p240, %p241
      %p244 = scmp.ne.s32.totalorder %s229, %s243
      %p245 = scmp.eq.s32.totalorder %s29, 0
      %p246 = por %p244, %p245
      %s248 = sadd.s32 %s247, 1
      %p251 = scmp.eq.s32.totalorder %s23, 1
      %p252 = scmp.ne.s32.totalorder %s247, %s249
      %p253 = scmp.eq.s32.totalorder %s23, 0
      %p254 = por %p252, %p253
      %p255 = scmp.ne.s32.totalorder %s247, %s249
      %p256 = scmp.eq.s32.totalorder %s28, 1
      %p257 = por %p255, %p256
      %p258 = scmp.ne.s32.totalorder %s249, %s250
      %p259 = scmp.eq.s32.totalorder %s28, 0
      %p260 = por %p258, %p259
      %p261 = scmp.ne.s32.totalorder %s249, %s250
      %p262 = scmp.eq.s32.totalorder %s29, 1
      %p263 = por %p261, %p262
      %p265 = scmp.ne.s32.totalorder %s250, %s264
      %p266 = scmp.eq.s32.totalorder %s29, 0
      %p267 = por %p265, %p266
      %s269 = sadd.s32 %s268, 1
      %p272 = scmp.eq.s32.totalorder %s23, 1
      %p273 = scmp.ne.s32.totalorder %s268, %s270
      %p274 = scmp.eq.s32.totalorder %s23, 0
      %p275 = por %p273, %p274
      %p276 = scmp.ne.s32.totalorder %s268, %s270
      %p277 = scmp.eq.s32.totalorder %s28, 1
      %p278 = por %p276, %p277
      %p279 = scmp.ne.s32.totalorder %s270, %s271
      %p280 = scmp.eq.s32.totalorder %s28, 0
      %p281 = por %p279, %p280
      %p282 = scmp.ne.s32.totalorder %s270, %s271
      %p283 = scmp.eq.s32.totalorder %s29, 1
      %p284 = por %p282, %p283
      %p286 = scmp.ne.s32.totalorder %s271, %s285
      %p287 = scmp.eq.s32.totalorder %s29, 0
      %p288 = por %p286, %p287
      %s290 = sadd.s32 %s289, 1
      %p293 = scmp.eq.s32.totalorder %s23, 1
      %p294 = scmp.ne.s32.totalorder %s289, %s291
      %p295 = scmp.eq.s32.totalorder %s23, 0
      %p296 = por %p294, %p295
      %p297 = scmp.ne.s32.totalorder %s289, %s291
      %p298 = scmp.eq.s32.totalorder %s28, 1
      %p299 = por %p297, %p298
      %p300 = scmp.ne.s32.totalorder %s291, %s292
      %p301 = scmp.eq.s32.totalorder %s28, 0
      %p302 = por %p300, %p301
      %p303 = scmp.ne.s32.totalorder %s291, %s292
      %p304 = scmp.eq.s32.totalorder %s29, 1
      %p305 = por %p303, %p304
      %p307 = scmp.ne.s32.totalorder %s292, %s306
      %p308 = scmp.eq.s32.totalorder %s29, 0
      %p309 = por %p307, %p308
      %s311 = sadd.s32 %s310, 1
      %p314 = scmp.eq.s32.totalorder %s23, 1
      %p315 = scmp.ne.s32.totalorder %s310, %s312
      %p316 = scmp.eq.s32.totalorder %s23, 0
      %p317 = por %p315, %p316
      %p318 = scmp.ne.s32.totalorder %s310, %s312
      %p319 = scmp.eq.s32.totalorder %s28, 1
      %p320 = por %p318, %p319
      %p321 = scmp.ne.s32.totalorder %s312, %s313
      %p322 = scmp.eq.s32.totalorder %s28, 0
      %p323 = por %p321, %p322
      %p324 = scmp.ne.s32.totalorder %s312, %s313
      %p325 = scmp.eq.s32.totalorder %s29, 1
      %p326 = por %p324, %p325
      %p328 = scmp.ne.s32.totalorder %s313, %s327
      %p329 = scmp.eq.s32.totalorder %s29, 0
      %p330 = por %p328, %p329
      %s332 = sadd.s32 %s331, 1
      %p335 = scmp.eq.s32.totalorder %s23, 1
      %p336 = scmp.ne.s32.totalorder %s331, %s333
      %p337 = scmp.eq.s32.totalorder %s23, 0
      %p338 = por %p336, %p337
      %p339 = scmp.ne.s32.totalorder %s331, %s333
      %p340 = scmp.eq.s32.totalorder %s28, 1
      %p341 = por %p339, %p340
      %p342 = scmp.ne.s32.totalorder %s333, %s334
      %p343 = scmp.eq.s32.totalorder %s28, 0
      %p344 = por %p342, %p343
      %p345 = scmp.ne.s32.totalorder %s333, %s334
      %p346 = scmp.eq.s32.totalorder %s29, 1
      %p347 = por %p345, %p346
      %p349 = scmp.ne.s32.totalorder %s334, %s348
      %p350 = scmp.eq.s32.totalorder %s29, 0
      %p351 = por %p349, %p350
      %s352 = ssub.s32 %s30, %s42
      %p353 = scmp.eq.s32.totalorder %s352, 0
      %s355 = sadd.s32 %s354, 1
      %s356 = scalar_select %p353, %s354, %s355
      %p359 = pneg %p353
      %p360 = scmp.eq.s32.totalorder %s23, 1
      %p361 = por %p359, %p360
      %p362 = scmp.ne.s32.totalorder %s354, %s357
      %p363 = scmp.eq.s32.totalorder %s23, 0
      %p364 = por %p362, %p363
      %p365 = scmp.ne.s32.totalorder %s354, %s357
      %p366 = scmp.eq.s32.totalorder %s28, 1
      %p367 = por %p365, %p366
      %p368 = scmp.ne.s32.totalorder %s357, %s358
      %p369 = scmp.eq.s32.totalorder %s28, 0
      %p370 = por %p368, %p369
      %p371 = scmp.ne.s32.totalorder %s357, %s358
      %p372 = scmp.eq.s32.totalorder %s29, 1
      %p373 = por %p371, %p372
      %p375 = scmp.ne.s32.totalorder %s358, %s374
      %p376 = scmp.eq.s32.totalorder %s29, 0
      %p377 = por %p375, %p376
      %p378 = scmp.le.s32.totalorder 1, %s23
      %p379 = scmp.lt.s32.totalorder %s23, 3
      %p380 = pnand %p378, %p379
      %p381 = pneg %p380
      // Predicated region
      $region9: #{tpu_custom_call.1} parent=5 // pred_check
        _
      $region10: #{tpu_custom_call.1} parent=5 // pred_check_branch
        %383 = sbr.rel (%p380) target = $region12
      $region11: #{tpu_custom_call.1} parent=5 // pred_region
        %s384 = ssub.s32 %s23, 1
        // Predicated region
        $region13: #{tpu_custom_call.1} parent=11 // pred_check
          %p385 = pneg %p61
        $region14: #{tpu_custom_call.1} parent=11 // pred_check_branch
          %387 = sbr.rel (%p385) target = $region16
        $region15: #{tpu_custom_call.1} parent=11 // pred_region
          %s388 = smul.u32 8, %s33
          %p389 = scmp.lt.s32.totalorder %s388, 7
          %s390 = scalar_select %p389, %s388, 7
          %s391 = smul.addr %s390, 8
          %s392 = scalar_lea.vmem %s0, %s391
          %s393 = smul.u32 8, %s33
        $region16: #{tpu_custom_call.1} parent=11 // pred_fallthru
          _
        // Predicated region
        $region17: #{tpu_custom_call.1} parent=11 // pred_check
          %p394 = pneg %p87
        $region18: #{tpu_custom_call.1} parent=11 // pred_check_branch
          %396 = sbr.rel (%p394) target = $region20
        $region19: #{tpu_custom_call.1} parent=11 // pred_region
          %s397 = smul.u32 8, %s33
          %p398 = scmp.lt.s32.totalorder %s397, 7
          %s399 = scalar_select %p398, %s397, 7
          %s400 = smul.addr %s399, 8
          %s401 = scalar_lea.vmem %s1, %s400
          %s402 = smul.u32 8, %s33
        $region20: #{tpu_custom_call.1} parent=11 // pred_fallthru
          _
        // Predicated region
        $region21: #{tpu_custom_call.1} parent=11 // pred_check
          %p403 = pneg %p134
        $region22: #{tpu_custom_call.1} parent=11 // pred_check_branch
          %405 = sbr.rel (%p403) target = $region24
        $region23: #{tpu_custom_call.1} parent=11 // pred_region
          _
        $region24: #{tpu_custom_call.1} parent=11 // pred_fallthru
          _
        // Predicated region
        $region25: #{tpu_custom_call.1} parent=11 // pred_check
          %p406 = pneg %p155
        $region26: #{tpu_custom_call.1} parent=11 // pred_check_branch
          %408 = sbr.rel (%p406) target = $region28
        $region27: #{tpu_custom_call.1} parent=11 // pred_region
          _
        $region28: #{tpu_custom_call.1} parent=11 // pred_fallthru
          _
        // Predicated region
        $region29: #{tpu_custom_call.1} parent=11 // pred_check
          %p409 = pneg %p176
        $region30: #{tpu_custom_call.1} parent=11 // pred_check_branch
          %411 = sbr.rel (%p409) target = $region32
        $region31: #{tpu_custom_call.1} parent=11 // pred_region
          _
        $region32: #{tpu_custom_call.1} parent=11 // pred_fallthru
          _
        // Predicated region
        $region33: #{tpu_custom_call.1} parent=11 // pred_check
          %p412 = pneg %p197
        $region34: #{tpu_custom_call.1} parent=11 // pred_check_branch
          %414 = sbr.rel (%p412) target = $region36
        $region35: #{tpu_custom_call.1} parent=11 // pred_region
          _
        $region36: #{tpu_custom_call.1} parent=11 // pred_fallthru
          _
        // Predicated region
        $region37: #{tpu_custom_call.1} parent=11 // pred_check
          %p415 = pneg %p218
        $region38: #{tpu_custom_call.1} parent=11 // pred_check_branch
          %417 = sbr.rel (%p415) target = $region40
        $region39: #{tpu_custom_call.1} parent=11 // pred_region
          _
        $region40: #{tpu_custom_call.1} parent=11 // pred_fallthru
          _
        // Predicated region
        $region41: #{tpu_custom_call.1} parent=11 // pred_check
          %p418 = pneg %p239
        $region42: #{tpu_custom_call.1} parent=11 // pred_check_branch
          %420 = sbr.rel (%p418) target = $region44
        $region43: #{tpu_custom_call.1} parent=11 // pred_region
          _
        $region44: #{tpu_custom_call.1} parent=11 // pred_fallthru
          _
        // Predicated region
        $region45: #{tpu_custom_call.1} parent=11 // pred_check
          %p421 = pneg %p260
        $region46: #{tpu_custom_call.1} parent=11 // pred_check_branch
          %423 = sbr.rel (%p421) target = $region48
        $region47: #{tpu_custom_call.1} parent=11 // pred_region
          _
        $region48: #{tpu_custom_call.1} parent=11 // pred_fallthru
          _
        // Predicated region
        $region49: #{tpu_custom_call.1} parent=11 // pred_check
          %p424 = pneg %p281
        $region50: #{tpu_custom_call.1} parent=11 // pred_check_branch
          %426 = sbr.rel (%p424) target = $region52
        $region51: #{tpu_custom_call.1} parent=11 // pred_region
          _
        $region52: #{tpu_custom_call.1} parent=11 // pred_fallthru
          _
        // Predicated region
        $region53: #{tpu_custom_call.1} parent=11 // pred_check
          %p427 = pneg %p302
        $region54: #{tpu_custom_call.1} parent=11 // pred_check_branch
          %429 = sbr.rel (%p427) target = $region56
        $region55: #{tpu_custom_call.1} parent=11 // pred_region
          _
        $region56: #{tpu_custom_call.1} parent=11 // pred_fallthru
          _
        // Predicated region
        $region57: #{tpu_custom_call.1} parent=11 // pred_check
          %p430 = pneg %p323
        $region58: #{tpu_custom_call.1} parent=11 // pred_check_branch
          %432 = sbr.rel (%p430) target = $region60
        $region59: #{tpu_custom_call.1} parent=11 // pred_region
          _
        $region60: #{tpu_custom_call.1} parent=11 // pred_fallthru
          _
        // Predicated region
        $region61: #{tpu_custom_call.1} parent=11 // pred_check
          %p433 = pneg %p344
        $region62: #{tpu_custom_call.1} parent=11 // pred_check_branch
          %435 = sbr.rel (%p433) target = $region64
        $region63: #{tpu_custom_call.1} parent=11 // pred_region
          _
        $region64: #{tpu_custom_call.1} parent=11 // pred_fallthru
          _
      $region12: #{tpu_custom_call.1} parent=5 // pred_fallthru
        _
      %p436 = scmp.lt.s32.totalorder %s23, 2
      // Predicated region
      $region65: #{tpu_custom_call.1} parent=5 // pred_check
        %p437 = pneg %p436
      $region66: #{tpu_custom_call.1} parent=5 // pred_check_branch
        %439 = sbr.rel (%p437) target = $region68
      $region67: #{tpu_custom_call.1} parent=5 // pred_region
        // Predicated region
        $region69: #{tpu_custom_call.1} parent=67 // pred_check
          %p440 = pneg %p107
        $region70: #{tpu_custom_call.1} parent=67 // pred_check_branch
          %442 = sbr.rel (%p440) target = $region72
        $region71: #{tpu_custom_call.1} parent=67 // pred_region
          %p443 = scmp.lt.s32.totalorder %s30, 1
          %s444 = scalar_select %p443, %s30, 1
          %s445 = smul.addr %s444, 8
          %s446 = scalar_lea.vmem %s2, %s445
        $region72: #{tpu_custom_call.1} parent=67 // pred_fallthru
          _
      $region68: #{tpu_custom_call.1} parent=5 // pred_fallthru
        _
      %p447 = scmp.le.s32.totalorder 1, %s23
      %p448 = scmp.lt.s32.totalorder %s23, 3
      %p449 = pnand %p447, %p448
      %p450 = pneg %p449
      // Predicated region
      $region73: #{tpu_custom_call.1} parent=5 // pred_check
        _
      $region74: #{tpu_custom_call.1} parent=5 // pred_check_branch
        %452 = sbr.rel (%p449) target = $region76
      $region75: #{tpu_custom_call.1} parent=5 // pred_region
        %s453 = ssub.s32 %s23, 1
        %s454 = smul.u32 8, %s33
        %p455 = scmp.lt.s32.totalorder %s454, 7
        %s456 = scalar_select %p455, %s454, 7
        %s457 = smul.addr %s456, 8
        %s458 = scalar_lea.vmem %s0, %s457
        %p459 = pneg %p61
        %p460 = pneg %p58
        %s461 = smul.u32 8, %s33
        %p462 = scmp.lt.s32.totalorder %s461, 7
        %s463 = scalar_select %p462, %s461, 7
        %s464 = smul.addr %s463, 8
        %s465 = scalar_lea.vmem %s1, %s464
        %p466 = pneg %p87
        %p467 = pneg %p84
        %p468 = scmp.lt.s32.totalorder %s32, 1
        %s469 = scalar_select %p468, %s32, 1
        %s470 = smul.addr %s469, 8
        %s471 = scalar_lea.vmem %s2, %s470
        %p472 = pneg %p113
        %p473 = pneg %p110
        %p474 = pneg %p134
        %p475 = pneg %p131
        %p476 = pneg %p155
        %p477 = pneg %p152
        %p478 = pneg %p176
        %p479 = pneg %p173
        %p480 = pneg %p197
        %p481 = pneg %p194
        %p482 = pneg %p218
        %p483 = pneg %p215
        %p484 = pneg %p239
        %p485 = pneg %p236
        %p486 = pneg %p260
        %p487 = pneg %p257
        %p488 = pneg %p281
        %p489 = pneg %p278
        %p490 = pneg %p302
        %p491 = pneg %p299
        %p492 = pneg %p323
        %p493 = pneg %p320
        %p494 = pneg %p344
        %p495 = pneg %p341
        %p496 = pneg %p370
        %p497 = pneg %p367
        %s498 = sand.u32 %s357, 1
        %s499 = scalar_lea.sflag [#allocation4], %s498
        %s500 = sand.u32 %s357, 1
        %s501 = smul.addr %s500, 8
        %s502 = scalar_lea.vmem [#allocation3], %s501
        %s503 = smul.u32 8, %s33
        %p504 = scmp.lt.s32.totalorder %s503, 7
        %s505 = scalar_select %p504, %s503, 7
        %s506 = smul.addr %s505, 8
        %s507 = scalar_lea.vmem %s0, %s506
        %s508 = smul.u32 8, %s33
        %s509 = smul.u32 8, %s33
        %p510 = scmp.lt.s32.totalorder %s509, 7
        %s511 = scalar_select %p510, %s509, 7
        %s512 = smul.addr %s511, 8
        %s513 = scalar_lea.vmem %s1, %s512
        %s514 = smul.u32 8, %s33
        %p515 = scmp.lt.s32.totalorder %s32, 1
        %s516 = scalar_select %p515, %s32, 1
        %s517 = smul.addr %s516, 8
        %s518 = scalar_lea.vmem %s2, %s517
        %p519 = scmp.eq.s32.totalorder %s33, 0
        // Predicated region
        $region77: #{tpu_custom_call.1} parent=75 // pred_check
          %p520 = pneg %p519
        $region78: #{tpu_custom_call.1} parent=75 // pred_check_branch
          %522 = sbr.rel (%p520) target = $region80
        $region79: #{tpu_custom_call.1} parent=75 // pred_region
          %vm523 = vcmask 64512
          %524 = vst.msk [vmem:[#allocation2] sm:$0xff] %vm523, 0.0
        $region80: #{tpu_custom_call.1} parent=75 // pred_fallthru
          _
        %v525 = vld [vmem:[%s513] sm:$0xff]
        %v526 = vld [vmem:[%s513 + $0x8] sm:$0xff]
        %v527 = vld [vmem:[%s513 + $0x10] sm:$0xff]
        %v528 = vld [vmem:[%s513 + $0x18] sm:$0xff]
        %v529 = vld [vmem:[%s513 + $0x20] sm:$0xff]
        %v530 = vld [vmem:[%s513 + $0x28] sm:$0xff]
        %v531 = vld [vmem:[%s513 + $0x30] sm:$0xff]
        %v532 = vld [vmem:[%s513 + $0x38] sm:$0xff]
        %v533 = vld [vmem:[%s507] sm:$0xff]
        %v534 = vld [vmem:[%s507 + $0x8] sm:$0xff]
        %v535 = vld [vmem:[%s507 + $0x10] sm:$0xff]
        %v536 = vld [vmem:[%s507 + $0x18] sm:$0xff]
        %v537 = vld [vmem:[%s507 + $0x20] sm:$0xff]
        %v538 = vld [vmem:[%s507 + $0x28] sm:$0xff]
        %v539 = vld [vmem:[%s507 + $0x30] sm:$0xff]
        %v540 = vld [vmem:[%s507 + $0x38] sm:$0xff]
        %s541 = smul.u32 %s32, 8
        %v542 = vstv %s541
        %v543 = vsub.s32 %v533, %v542
        %v544 = vsub.s32 %v534, %v542
        %v545 = vsub.s32 %v535, %v542
        %v546 = vsub.s32 %v536, %v542
        %v547 = vsub.s32 %v537, %v542
        %v548 = vsub.s32 %v538, %v542
        %v549 = vsub.s32 %v539, %v542
        %v550 = vsub.s32 %v540, %v542
        %v551 = vlaneseq
        %v552 = vand.u32 %v551, 127
        %553 = vset.pattern.permute.xlu0 0
        %554 = vperm.xlu0 %553, %v543
        %v555 = vpop.permute.xlu0 %554
        %556 = vset.pattern.permute.xlu0 0
        %557 = vperm.xlu0 %556, %v544
        %v558 = vpop.permute.xlu0 %557
        %559 = vset.pattern.permute.xlu0 0
        %560 = vperm.xlu0 %559, %v545
        %v561 = vpop.permute.xlu0 %560
        %562 = vset.pattern.permute.xlu0 0
        %563 = vperm.xlu0 %562, %v546
        %v564 = vpop.permute.xlu0 %563
        %565 = vset.pattern.permute.xlu0 0
        %566 = vperm.xlu0 %565, %v547
        %v567 = vpop.permute.xlu0 %566
        %568 = vset.pattern.permute.xlu0 0
        %569 = vperm.xlu0 %568, %v548
        %v570 = vpop.permute.xlu0 %569
        %571 = vset.pattern.permute.xlu0 0
        %572 = vperm.xlu0 %571, %v549
        %v573 = vpop.permute.xlu0 %572
        %574 = vset.pattern.permute.xlu0 0
        %575 = vperm.xlu0 %574, %v550
        %v576 = vpop.permute.xlu0 %575
        %vm577 = vcmp.eq.s32.totalorder %v552, %v555
        %vm578 = vcmp.eq.s32.totalorder %v552, %v558
        %vm579 = vcmp.eq.s32.totalorder %v552, %v561
        %vm580 = vcmp.eq.s32.totalorder %v552, %v564
        %vm581 = vcmp.eq.s32.totalorder %v552, %v567
        %vm582 = vcmp.eq.s32.totalorder %v552, %v570
        %vm583 = vcmp.eq.s32.totalorder %v552, %v573
        %vm584 = vcmp.eq.s32.totalorder %v552, %v576
        %v585 = vsel %vm577, 1, 0
        %v586 = vsel %vm578, 1, 0
        %v587 = vsel %vm579, 1, 0
        %v588 = vsel %vm580, 1, 0
        %v589 = vsel %vm581, 1, 0
        %v590 = vsel %vm582, 1, 0
        %v591 = vsel %vm583, 1, 0
        %v592 = vsel %vm584, 1, 0
        %v593 = vcvt.s32.f32 %v585
        %v594 = vcvt.s32.f32 %v586
        %v595 = vcvt.s32.f32 %v587
        %v596 = vcvt.s32.f32 %v588
        %v597 = vcvt.s32.f32 %v589
        %v598 = vcvt.s32.f32 %v590
        %v599 = vcvt.s32.f32 %v591
        %v600 = vcvt.s32.f32 %v592
        %v601 = vld [vmem:[#allocation2] sm:$0xff]
        %602 = vxpose.xlu0.b32.start [1/16] %v525, 128
        %603 = vxpose.xlu0.b32.cont [2/16] %v526, 128
        %604 = vxpose.xlu0.b32.cont [3/16] %v527, 128
        %605 = vxpose.xlu0.b32.cont [4/16] %v528, 128
        %606 = vxpose.xlu0.b32.cont [5/16] %v529, 128
        %607 = vxpose.xlu0.b32.cont [6/16] %v530, 128
        %608 = vxpose.xlu0.b32.cont [7/16] %v531, 128
        %609 = vxpose.xlu0.b32.cont [8/16] %v532, 128
        %610 = vxpose.xlu0.b32.cont [9/16] 0.0, 128
        %611 = vxpose.xlu0.b32.cont [10/16] 0.0, 128
        %612 = vxpose.xlu0.b32.cont [11/16] 0.0, 128
        %613 = vxpose.xlu0.b32.cont [12/16] 0.0, 128
        %614 = vxpose.xlu0.b32.cont [13/16] 0.0, 128
        %615 = vxpose.xlu0.b32.cont [14/16] 0.0, 128
        %616 = vxpose.xlu0.b32.cont [15/16] 0.0, 128
        %617 = vxpose.xlu0.b32.end [16/16] 0.0, 128
        %v618 = vpop.trf.xlu0
        %v619 = vpop.trf.xlu0
        %v620 = vpop.trf.xlu0
        %v621 = vpop.trf.xlu0
        %v622 = vpop.trf.xlu0
        %v623 = vpop.trf.xlu0
        %v624 = vpop.trf.xlu0
        %v625 = vpop.trf.xlu0
        %v626 = vpop.trf.xlu0
        %v627 = vpop.trf.xlu0
        %v628 = vpop.trf.xlu0
        %v629 = vpop.trf.xlu0
        %v630 = vpop.trf.xlu0
        %v631 = vpop.trf.xlu0
        %v632 = vpop.trf.xlu0
        %v633 = vpop.trf.xlu0
        %vm634 = vcmask 523264
        %v636 = vsel %vm634, %v618, 0
        %638 = vmatprep.subr.mxu0 0.0
        %639 = vmatpush1.msra.mxu0 0.0
        %640 = vmatprep.subr.mxu0 0.0
        %641 = vmatpush1.msra.mxu0 0.0
        %642 = vmatprep.subr.mxu0 0.0
        %643 = vmatpush1.msra.mxu0 0.0
        %644 = vmatprep.subr.mxu0 0.0
        %645 = vmatpush1.msra.mxu0 0.0
        %646 = vmatprep.subr.mxu0 0.0
        %647 = vmatpush1.msra.mxu0 0.0
        %648 = vmatprep.subr.mxu0 0.0
        %649 = vmatpush1.msra.mxu0 0.0
        %650 = vmatprep.subr.mxu0 0.0
        %651 = vmatpush1.msra.mxu0 0.0
        %652 = vmatprep.subr.mxu0 0.0
        %653 = vmatpush1.msra.mxu0 0.0
        %654 = vmatprep.subr.mxu0 0.0
        %655 = vmatpush1.msra.mxu0 %v600
        %656 = vmatprep.subr.mxu0 0.0
        %657 = vmatpush1.msra.mxu0 %v599
        %658 = vmatprep.subr.mxu0 0.0
        %659 = vmatpush1.msra.mxu0 %v598
        %660 = vmatprep.subr.mxu0 0.0
        %661 = vmatpush1.msra.mxu0 %v597
        %662 = vmatprep.subr.mxu0 0.0
        %663 = vmatpush1.msra.mxu0 %v596
        %664 = vmatprep.subr.mxu0 0.0
        %665 = vmatpush1.msra.mxu0 %v595
        %666 = vmatprep.subr.mxu0 0.0
        %667 = vmatpush1.msra.mxu0 %v594
        %668 = vmatprep.subr.mxu0 0.0
        %669 = vmatpush1.msra.mxu0 %v593
        %670 = vmatprep.subr.mxu0 0.0
        %671 = vmatpush2.msra.mxu0 0.0
        %672 = vmatprep.subr.mxu0 0.0
        %673 = vmatpush2.msra.mxu0 0.0
        %674 = vmatprep.subr.mxu0 0.0
        %675 = vmatpush2.msra.mxu0 0.0
        %676 = vmatprep.subr.mxu0 0.0
        %677 = vmatpush2.msra.mxu0 0.0
        %678 = vmatprep.subr.mxu0 0.0
        %679 = vmatpush2.msra.mxu0 0.0
        %680 = vmatprep.subr.mxu0 0.0
        %681 = vmatpush2.msra.mxu0 0.0
        %682 = vmatprep.subr.mxu0 0.0
        %683 = vmatpush2.msra.mxu0 0.0
        %684 = vmatprep.subr.mxu0 0.0
        %685 = vmatpush2.msra.mxu0 0.0
        %686 = vmatprep.subr.mxu0 0.0
        %687 = vmatpush2.msra.mxu0 0.0
        %688 = vmatprep.subr.mxu0 0.0
        %689 = vmatpush2.msra.mxu0 0.0
        %690 = vmatprep.subr.mxu0 0.0
        %691 = vmatpush2.msra.mxu0 0.0
        %692 = vmatprep.subr.mxu0 0.0
        %693 = vmatpush2.msra.mxu0 0.0
        %694 = vmatprep.subr.mxu0 0.0
        %695 = vmatpush2.msra.mxu0 0.0
        %696 = vmatprep.subr.mxu0 0.0
        %697 = vmatpush2.msra.mxu0 0.0
        %698 = vmatprep.subr.mxu0 0.0
        %699 = vmatpush2.msra.mxu0 0.0
        %700 = vmatprep.subr.mxu0 0.0
        %701 = vmatpush2.msra.mxu0 0.0
        %702 = vmatprep.mubr.f32.mxu0 0.0
        %703 = vmatmul.mubr.f32.gmra.mxu0 %v636
        %v704 = vpop.f32.mrf.mxu0
        %v705 = vadd.f32 0.0, %v704
        %v706 = vpop.f32.mrf.mxu0
        %707 = vdwg.mxu0
        %v708 = vadd.f32 %v601, %v705
        %vm709 = vcmask 64512
        %710 = vst.msk [vmem:[#allocation2] sm:$0xff] %vm709, %v708
        // Predicated region
        $region81: #{tpu_custom_call.1} parent=75 // pred_check
          %p711 = pneg %p519
        $region82: #{tpu_custom_call.1} parent=75 // pred_check_branch
          %713 = sbr.rel (%p711) target = $region84
        $region83: #{tpu_custom_call.1} parent=75 // pred_region
          %v714 = vld [vmem:[#allocation2] sm:$0xff]
          %v715 = vld [vmem:[%s518] sm:$0xff]
          %v716 = vld [vmem:[%s3] sm:$0xff]
          %v717 = vld [vmem:[%s4] sm:$0xff]
          %v719 = vsel %vm709, %v715, 0
          %721 = vmatprep.subr.mxu0 0.0
          %722 = vmatpush1.msra.mxu0 0.0
          %723 = vmatprep.subr.mxu0 0.0
          %724 = vmatpush1.msra.mxu0 0.0
          %725 = vmatprep.subr.mxu0 0.0
          %726 = vmatpush1.msra.mxu0 0.0
          %727 = vmatprep.subr.mxu0 0.0
          %728 = vmatpush1.msra.mxu0 0.0
          %729 = vmatprep.subr.mxu0 0.0
          %730 = vmatpush1.msra.mxu0 0.0
          %731 = vmatprep.subr.mxu0 0.0
          %732 = vmatpush1.msra.mxu0 0.0
          %733 = vmatprep.subr.mxu0 0.0
          %734 = vmatpush1.msra.mxu0 0.0
          %735 = vmatprep.subr.mxu0 0.0
          %736 = vmatpush1.msra.mxu0 0.0
          %737 = vmatprep.subr.mxu0 0.0
          %738 = vmatpush1.msra.mxu0 0.0
          %739 = vmatprep.subr.mxu0 0.0
          %740 = vmatpush1.msra.mxu0 0.0
          %741 = vmatprep.subr.mxu0 0.0
          %742 = vmatpush1.msra.mxu0 0.0
          %743 = vmatprep.subr.mxu0 0.0
          %744 = vmatpush1.msra.mxu0 0.0
          %745 = vmatprep.subr.mxu0 0.0
          %746 = vmatpush1.msra.mxu0 0.0
          %747 = vmatprep.subr.mxu0 0.0
          %748 = vmatpush1.msra.mxu0 0.0
          %749 = vmatprep.subr.mxu0 0.0
          %750 = vmatpush1.msra.mxu0 0.0
          %751 = vmatprep.subr.mxu0 0.0
          %752 = vmatpush1.msra.mxu0 %v717
          %753 = vmatprep.subr.mxu0 0.0
          %754 = vmatpush2.msra.mxu0 0.0
          %755 = vmatprep.subr.mxu0 0.0
          %756 = vmatpush2.msra.mxu0 0.0
          %757 = vmatprep.subr.mxu0 0.0
          %758 = vmatpush2.msra.mxu0 0.0
          %759 = vmatprep.subr.mxu0 0.0
          %760 = vmatpush2.msra.mxu0 0.0
          %761 = vmatprep.subr.mxu0 0.0
          %762 = vmatpush2.msra.mxu0 0.0
          %763 = vmatprep.subr.mxu0 0.0
          %764 = vmatpush2.msra.mxu0 0.0
          %765 = vmatprep.subr.mxu0 0.0
          %766 = vmatpush2.msra.mxu0 0.0
          %767 = vmatprep.subr.mxu0 0.0
          %768 = vmatpush2.msra.mxu0 0.0
          %769 = vmatprep.subr.mxu0 0.0
          %770 = vmatpush2.msra.mxu0 0.0
          %771 = vmatprep.subr.mxu0 0.0
          %772 = vmatpush2.msra.mxu0 0.0
          %773 = vmatprep.subr.mxu0 0.0
          %774 = vmatpush2.msra.mxu0 0.0
          %775 = vmatprep.subr.mxu0 0.0
          %776 = vmatpush2.msra.mxu0 0.0
          %777 = vmatprep.subr.mxu0 0.0
          %778 = vmatpush2.msra.mxu0 0.0
          %779 = vmatprep.subr.mxu0 0.0
          %780 = vmatpush2.msra.mxu0 0.0
          %781 = vmatprep.subr.mxu0 0.0
          %782 = vmatpush2.msra.mxu0 0.0
          %783 = vmatprep.subr.mxu0 0.0
          %784 = vmatpush2.msra.mxu0 0.0
          %785 = vmatprep.mubr.f32.mxu0 0.0
          %786 = vmatmul.mubr.f32.gmra.mxu0 %v719
          %v787 = vpop.f32.mrf.mxu0
          %v788 = vadd.f32 0.0, %v787
          %v789 = vpop.f32.mrf.mxu0
          %790 = vdwg.mxu0
          %791 = vxpose.xlu0.b32.start [1/16] %v714, 128
          %792 = vxpose.xlu0.b32.cont [2/16] 0.0, 128
          %793 = vxpose.xlu0.b32.cont [3/16] 0.0, 128
          %794 = vxpose.xlu0.b32.cont [4/16] 0.0, 128
          %795 = vxpose.xlu0.b32.cont [5/16] 0.0, 128
          %796 = vxpose.xlu0.b32.cont [6/16] 0.0, 128
          %797 = vxpose.xlu0.b32.cont [7/16] 0.0, 128
          %798 = vxpose.xlu0.b32.cont [8/16] 0.0, 128
          %799 = vxpose.xlu0.b32.cont [9/16] 0.0, 128
          %800 = vxpose.xlu0.b32.cont [10/16] 0.0, 128
          %801 = vxpose.xlu0.b32.cont [11/16] 0.0, 128
          %802 = vxpose.xlu0.b32.cont [12/16] 0.0, 128
          %803 = vxpose.xlu0.b32.cont [13/16] 0.0, 128
          %804 = vxpose.xlu0.b32.cont [14/16] 0.0, 128
          %805 = vxpose.xlu0.b32.cont [15/16] 0.0, 128
          %806 = vxpose.xlu0.b32.end [16/16] 0.0, 128
          %v807 = vpop.trf.xlu0
          %v808 = vpop.trf.xlu0
          %v809 = vpop.trf.xlu0
          %v810 = vpop.trf.xlu0
          %v811 = vpop.trf.xlu0
          %v812 = vpop.trf.xlu0
          %v813 = vpop.trf.xlu0
          %v814 = vpop.trf.xlu0
          %v815 = vpop.trf.xlu0
          %v816 = vpop.trf.xlu0
          %v817 = vpop.trf.xlu0
          %v818 = vpop.trf.xlu0
          %v819 = vpop.trf.xlu0
          %v820 = vpop.trf.xlu0
          %v821 = vpop.trf.xlu0
          %v822 = vpop.trf.xlu0
          %v824 = vsel %vm709, %v807, 0
          %826 = vmatprep.subr.mxu0 0.0
          %827 = vmatpush1.msra.mxu0 0.0
          %828 = vmatprep.subr.mxu0 0.0
          %829 = vmatpush1.msra.mxu0 0.0
          %830 = vmatprep.subr.mxu0 0.0
          %831 = vmatpush1.msra.mxu0 0.0
          %832 = vmatprep.subr.mxu0 0.0
          %833 = vmatpush1.msra.mxu0 0.0
          %834 = vmatprep.subr.mxu0 0.0
          %835 = vmatpush1.msra.mxu0 0.0
          %836 = vmatprep.subr.mxu0 0.0
          %837 = vmatpush1.msra.mxu0 0.0
          %838 = vmatprep.subr.mxu0 0.0
          %839 = vmatpush1.msra.mxu0 0.0
          %840 = vmatprep.subr.mxu0 0.0
          %841 = vmatpush1.msra.mxu0 0.0
          %842 = vmatprep.subr.mxu0 0.0
          %843 = vmatpush1.msra.mxu0 0.0
          %844 = vmatprep.subr.mxu0 0.0
          %845 = vmatpush1.msra.mxu0 0.0
          %846 = vmatprep.subr.mxu0 0.0
          %847 = vmatpush1.msra.mxu0 0.0
          %848 = vmatprep.subr.mxu0 0.0
          %849 = vmatpush1.msra.mxu0 0.0
          %850 = vmatprep.subr.mxu0 0.0
          %851 = vmatpush1.msra.mxu0 0.0
          %852 = vmatprep.subr.mxu0 0.0
          %853 = vmatpush1.msra.mxu0 0.0
          %854 = vmatprep.subr.mxu0 0.0
          %855 = vmatpush1.msra.mxu0 0.0
          %856 = vmatprep.subr.mxu0 0.0
          %857 = vmatpush1.msra.mxu0 %v716
          %858 = vmatprep.subr.mxu0 0.0
          %859 = vmatpush2.msra.mxu0 0.0
          %860 = vmatprep.subr.mxu0 0.0
          %861 = vmatpush2.msra.mxu0 0.0
          %862 = vmatprep.subr.mxu0 0.0
          %863 = vmatpush2.msra.mxu0 0.0
          %864 = vmatprep.subr.mxu0 0.0
          %865 = vmatpush2.msra.mxu0 0.0
          %866 = vmatprep.subr.mxu0 0.0
          %867 = vmatpush2.msra.mxu0 0.0
          %868 = vmatprep.subr.mxu0 0.0
          %869 = vmatpush2.msra.mxu0 0.0
          %870 = vmatprep.subr.mxu0 0.0
          %871 = vmatpush2.msra.mxu0 0.0
          %872 = vmatprep.subr.mxu0 0.0
          %873 = vmatpush2.msra.mxu0 0.0
          %874 = vmatprep.subr.mxu0 0.0
          %875 = vmatpush2.msra.mxu0 0.0
          %876 = vmatprep.subr.mxu0 0.0
          %877 = vmatpush2.msra.mxu0 0.0
          %878 = vmatprep.subr.mxu0 0.0
          %879 = vmatpush2.msra.mxu0 0.0
          %880 = vmatprep.subr.mxu0 0.0
          %881 = vmatpush2.msra.mxu0 0.0
          %882 = vmatprep.subr.mxu0 0.0
          %883 = vmatpush2.msra.mxu0 0.0
          %884 = vmatprep.subr.mxu0 0.0
          %885 = vmatpush2.msra.mxu0 0.0
          %886 = vmatprep.subr.mxu0 0.0
          %887 = vmatpush2.msra.mxu0 0.0
          %888 = vmatprep.subr.mxu0 0.0
          %889 = vmatpush2.msra.mxu0 0.0
          %890 = vmatprep.mubr.f32.mxu0 0.0
          %891 = vmatmul.mubr.f32.gmra.mxu0 %v824
          %v892 = vpop.f32.mrf.mxu0
          %v893 = vadd.f32 %v788, %v892
          %v894 = vpop.f32.mrf.mxu0
          %895 = vdwg.mxu0
          %v896 = vld [vmem:[%s5] sm:$0x1]
          %v898 = vlaneseq
          %v899 = vshrl.u32 %v898, 7
          %v900 = vsub.s32 0, %v899
          %v901 = vrot.slane %v896, %v900
          %v903 = vadd.f32 %v893, %v901
          %v904 = vld [vmem:[%s6] sm:$0x1]
          %v905 = vld [vmem:[%s7] sm:$0x1]
          %vm906 = vcmask 261120
          %v907 = vsel %vm906, %v903, 0.0
          %908 = vadd.xlane.f32.xlu0 %v907
          %v909 = vpop.xlane.xlu0 %908
          %v910 = vrcp.pop 32.0
          %v911 = vmul.f32 %v909, %v910
          %v912 = vsub.f32 %v903, %v911
          %v913 = vmul.f32 %v912, %v912
          %v914 = vsel %vm906, %v913, 0.0
          %915 = vadd.xlane.f32.xlu0 %v914
          %v916 = vpop.xlane.xlu0 %915
          %v917 = vmul.f32 %v916, %v910
          %v918 = vadd.f32 %v917, 1e-05
          %v919 = vrsqrt.pop %v918
          %v920 = vmul.f32 %v912, %v919
          %v922 = vlaneseq
          %v923 = vshrl.u32 %v922, 7
          %v924 = vsub.s32 0, %v923
          %v925 = vrot.slane %v904, %v924
          %v927 = vmul.f32 %v920, %v925
          %v929 = vlaneseq
          %v930 = vshrl.u32 %v929, 7
          %v931 = vsub.s32 0, %v930
          %v932 = vrot.slane %v905, %v931
          %v934 = vadd.f32 %v927, %v932
          %v935 = vtanh.pop %v934
          %v936 = vld [vmem:[%s8] sm:$0xff]
          %v937 = vld [vmem:[%s8 + $0x8] sm:$0xff]
          %v938 = vld [vmem:[%s8 + $0x10] sm:$0xff]
          %v939 = vld [vmem:[%s8 + $0x18] sm:$0xff]
          %v940 = vld [vmem:[%s9] sm:$0x1]
          %v942 = vlaneseq
          %v943 = vshrl.u32 %v942, 7
          %v944 = vsub.s32 0, %v943
          %v945 = vrot.slane %v940, %v944
          %v948 = vsel %vm906, %v935, 0
          %950 = vmatprep.subr.mxu0 0.0
          %951 = vmatpush1.msra.mxu0 0.0
          %952 = vmatprep.subr.mxu0 0.0
          %953 = vmatpush1.msra.mxu0 0.0
          %954 = vmatprep.subr.mxu0 0.0
          %955 = vmatpush1.msra.mxu0 0.0
          %956 = vmatprep.subr.mxu0 0.0
          %957 = vmatpush1.msra.mxu0 0.0
          %958 = vmatprep.subr.mxu0 0.0
          %959 = vmatpush1.msra.mxu0 0.0
          %960 = vmatprep.subr.mxu0 0.0
          %961 = vmatpush1.msra.mxu0 0.0
          %962 = vmatprep.subr.mxu0 0.0
          %963 = vmatpush1.msra.mxu0 0.0
          %964 = vmatprep.subr.mxu0 0.0
          %965 = vmatpush1.msra.mxu0 0.0
          %966 = vmatprep.subr.mxu0 0.0
          %967 = vmatpush1.msra.mxu0 0.0
          %968 = vmatprep.subr.mxu0 0.0
          %969 = vmatpush1.msra.mxu0 0.0
          %970 = vmatprep.subr.mxu0 0.0
          %971 = vmatpush1.msra.mxu0 0.0
          %972 = vmatprep.subr.mxu0 0.0
          %973 = vmatpush1.msra.mxu0 0.0
          %974 = vmatprep.subr.mxu0 0.0
          %975 = vmatpush1.msra.mxu0 %v939
          %976 = vmatprep.subr.mxu0 0.0
          %977 = vmatpush1.msra.mxu0 %v938
          %978 = vmatprep.subr.mxu0 0.0
          %979 = vmatpush1.msra.mxu0 %v937
          %980 = vmatprep.subr.mxu0 0.0
          %981 = vmatpush1.msra.mxu0 %v936
          %982 = vmatprep.subr.mxu0 0.0
          %983 = vmatpush2.msra.mxu0 0.0
          %984 = vmatprep.subr.mxu0 0.0
          %985 = vmatpush2.msra.mxu0 0.0
          %986 = vmatprep.subr.mxu0 0.0
          %987 = vmatpush2.msra.mxu0 0.0
          %988 = vmatprep.subr.mxu0 0.0
          %989 = vmatpush2.msra.mxu0 0.0
          %990 = vmatprep.subr.mxu0 0.0
          %991 = vmatpush2.msra.mxu0 0.0
          %992 = vmatprep.subr.mxu0 0.0
          %993 = vmatpush2.msra.mxu0 0.0
          %994 = vmatprep.subr.mxu0 0.0
          %995 = vmatpush2.msra.mxu0 0.0
          %996 = vmatprep.subr.mxu0 0.0
          %997 = vmatpush2.msra.mxu0 0.0
          %998 = vmatprep.subr.mxu0 0.0
          %999 = vmatpush2.msra.mxu0 0.0
          %1000 = vmatprep.subr.mxu0 0.0
          %1001 = vmatpush2.msra.mxu0 0.0
          %1002 = vmatprep.subr.mxu0 0.0
          %1003 = vmatpush2.msra.mxu0 0.0
          %1004 = vmatprep.subr.mxu0 0.0
          %1005 = vmatpush2.msra.mxu0 0.0
          %1006 = vmatprep.subr.mxu0 0.0
          %1007 = vmatpush2.msra.mxu0 0.0
          %1008 = vmatprep.subr.mxu0 0.0
          %1009 = vmatpush2.msra.mxu0 0.0
          %1010 = vmatprep.subr.mxu0 0.0
          %1011 = vmatpush2.msra.mxu0 0.0
          %1012 = vmatprep.subr.mxu0 0.0
          %1013 = vmatpush2.msra.mxu0 0.0
          %1014 = vmatprep.mubr.f32.mxu0 0.0
          %1015 = vmatmul.mubr.f32.gmra.mxu0 %v948
          %v1016 = vpop.f32.mrf.mxu0
          %v1017 = vadd.f32 %v945, %v1016
          %v1018 = vpop.f32.mrf.mxu0
          %1019 = vdwg.mxu0
          %v1020 = vld [vmem:[%s10] sm:$0x1]
          %v1021 = vld [vmem:[%s11] sm:$0x1]
          %v1022 = vsel %vm906, %v1017, 0.0
          %1023 = vadd.xlane.f32.xlu0 %v1022
          %v1024 = vpop.xlane.xlu0 %1023
          %v1025 = vmul.f32 %v1024, %v910
          %v1026 = vsub.f32 %v1017, %v1025
          %v1027 = vmul.f32 %v1026, %v1026
          %v1028 = vsel %vm906, %v1027, 0.0
          %1029 = vadd.xlane.f32.xlu0 %v1028
          %v1030 = vpop.xlane.xlu0 %1029
          %v1031 = vmul.f32 %v1030, %v910
          %v1032 = vadd.f32 %v1031, 1e-05
          %v1033 = vrsqrt.pop %v1032
          %v1034 = vmul.f32 %v1026, %v1033
          %v1036 = vlaneseq
          %v1037 = vshrl.u32 %v1036, 7
          %v1038 = vsub.s32 0, %v1037
          %v1039 = vrot.slane %v1020, %v1038
          %v1041 = vmul.f32 %v1034, %v1039
          %v1043 = vlaneseq
          %v1044 = vshrl.u32 %v1043, 7
          %v1045 = vsub.s32 0, %v1044
          %v1046 = vrot.slane %v1021, %v1045
          %v1048 = vadd.f32 %v1041, %v1046
          %v1049 = vtanh.pop %v1048
          %v1050 = vld [vmem:[%s12] sm:$0xff]
          %v1051 = vld [vmem:[%s12 + $0x8] sm:$0xff]
          %v1052 = vld [vmem:[%s12 + $0x10] sm:$0xff]
          %v1053 = vld [vmem:[%s12 + $0x18] sm:$0xff]
          %v1054 = vld [vmem:[%s13] sm:$0x1]
          %v1056 = vlaneseq
          %v1057 = vshrl.u32 %v1056, 7
          %v1058 = vsub.s32 0, %v1057
          %v1059 = vrot.slane %v1054, %v1058
          %v1062 = vsel %vm906, %v1049, 0
          %1064 = vmatprep.subr.mxu0 0.0
          %1065 = vmatpush1.msra.mxu0 0.0
          %1066 = vmatprep.subr.mxu0 0.0
          %1067 = vmatpush1.msra.mxu0 0.0
          %1068 = vmatprep.subr.mxu0 0.0
          %1069 = vmatpush1.msra.mxu0 0.0
          %1070 = vmatprep.subr.mxu0 0.0
          %1071 = vmatpush1.msra.mxu0 0.0
          %1072 = vmatprep.subr.mxu0 0.0
          %1073 = vmatpush1.msra.mxu0 0.0
          %1074 = vmatprep.subr.mxu0 0.0
          %1075 = vmatpush1.msra.mxu0 0.0
          %1076 = vmatprep.subr.mxu0 0.0
          %1077 = vmatpush1.msra.mxu0 0.0
          %1078 = vmatprep.subr.mxu0 0.0
          %1079 = vmatpush1.msra.mxu0 0.0
          %1080 = vmatprep.subr.mxu0 0.0
          %1081 = vmatpush1.msra.mxu0 0.0
          %1082 = vmatprep.subr.mxu0 0.0
          %1083 = vmatpush1.msra.mxu0 0.0
          %1084 = vmatprep.subr.mxu0 0.0
          %1085 = vmatpush1.msra.mxu0 0.0
          %1086 = vmatprep.subr.mxu0 0.0
          %1087 = vmatpush1.msra.mxu0 0.0
          %1088 = vmatprep.subr.mxu0 0.0
          %1089 = vmatpush1.msra.mxu0 %v1053
          %1090 = vmatprep.subr.mxu0 0.0
          %1091 = vmatpush1.msra.mxu0 %v1052
          %1092 = vmatprep.subr.mxu0 0.0
          %1093 = vmatpush1.msra.mxu0 %v1051
          %1094 = vmatprep.subr.mxu0 0.0
          %1095 = vmatpush1.msra.mxu0 %v1050
          %1096 = vmatprep.subr.mxu0 0.0
          %1097 = vmatpush2.msra.mxu0 0.0
          %1098 = vmatprep.subr.mxu0 0.0
          %1099 = vmatpush2.msra.mxu0 0.0
          %1100 = vmatprep.subr.mxu0 0.0
          %1101 = vmatpush2.msra.mxu0 0.0
          %1102 = vmatprep.subr.mxu0 0.0
          %1103 = vmatpush2.msra.mxu0 0.0
          %1104 = vmatprep.subr.mxu0 0.0
          %1105 = vmatpush2.msra.mxu0 0.0
          %1106 = vmatprep.subr.mxu0 0.0
          %1107 = vmatpush2.msra.mxu0 0.0
          %1108 = vmatprep.subr.mxu0 0.0
          %1109 = vmatpush2.msra.mxu0 0.0
          %1110 = vmatprep.subr.mxu0 0.0
          %1111 = vmatpush2.msra.mxu0 0.0
          %1112 = vmatprep.subr.mxu0 0.0
          %1113 = vmatpush2.msra.mxu0 0.0
          %1114 = vmatprep.subr.mxu0 0.0
          %1115 = vmatpush2.msra.mxu0 0.0
          %1116 = vmatprep.subr.mxu0 0.0
          %1117 = vmatpush2.msra.mxu0 0.0
          %1118 = vmatprep.subr.mxu0 0.0
          %1119 = vmatpush2.msra.mxu0 0.0
          %1120 = vmatprep.subr.mxu0 0.0
          %1121 = vmatpush2.msra.mxu0 0.0
          %1122 = vmatprep.subr.mxu0 0.0
          %1123 = vmatpush2.msra.mxu0 0.0
          %1124 = vmatprep.subr.mxu0 0.0
          %1125 = vmatpush2.msra.mxu0 0.0
          %1126 = vmatprep.subr.mxu0 0.0
          %1127 = vmatpush2.msra.mxu0 0.0
          %1128 = vmatprep.mubr.f32.mxu0 0.0
          %1129 = vmatmul.mubr.f32.gmra.mxu0 %v1062
          %v1130 = vpop.f32.mrf.mxu0
          %v1131 = vadd.f32 %v1059, %v1130
          %v1132 = vpop.f32.mrf.mxu0
          %1133 = vdwg.mxu0
          %1134 = vst [vmem:[%s502] sm:$0xff] %v1131
        $region84: #{tpu_custom_call.1} parent=75 // pred_fallthru
          _
        %s1135 = sand.u32 %s357, 1
        %s1136 = scalar_lea.sflag [#allocation4], %s1135
        %s1137 = sand.u32 %s357, 1
        %s1138 = smul.addr %s1137, 8
        %s1139 = scalar_lea.vmem [#allocation3], %s1138
        // Predicated region
        $region85: #{tpu_custom_call.1} parent=75 // pred_check
          %p1140 = pneg %p367
        $region86: #{tpu_custom_call.1} parent=75 // pred_check_branch
          %1142 = sbr.rel (%p1140) target = $region88
        $region87: #{tpu_custom_call.1} parent=75 // pred_region
          %s1144 = ssub.s32 128, 128
          %1145 = vsyncadd %s1136, %s1144
          %s1146 = smul.addr %s32, 128
          %s1147 = scalar_lea.hbm %s14, %s1146
          %s1149 = sshll.u32 %s1139, 4
          %s1150 = int_to_ptr.vmem [resolvable:$true] %s1149
          %1152 = dma.vmem_to_hbm [thread:$0]  %s1150, 128, %s1147, %s1136
        $region88: #{tpu_custom_call.1} parent=75 // pred_fallthru
          _
      $region76: #{tpu_custom_call.1} parent=5 // pred_fallthru
        _
      %p1153 = scmp.le.s32.totalorder 2, %s23
      // Predicated region
      $region89: #{tpu_custom_call.1} parent=5 // pred_check
        %p1154 = pneg %p1153
      $region90: #{tpu_custom_call.1} parent=5 // pred_check_branch
        %1156 = sbr.rel (%p1154) target = $region92
      $region91: #{tpu_custom_call.1} parent=5 // pred_region
        %s1157 = ssub.s32 %s23, 2
        // Predicated region
        $region93: #{tpu_custom_call.1} parent=91 // pred_check
          %p1158 = pneg %p373
        $region94: #{tpu_custom_call.1} parent=91 // pred_check_branch
          %1160 = sbr.rel (%p1158) target = $region96
        $region95: #{tpu_custom_call.1} parent=91 // pred_region
          %s1161 = sand.u32 %s358, 1
          %s1162 = scalar_lea.sflag [#allocation4], %s1161
          %s1163 = sand.u32 %s358, 1
          %s1164 = smul.addr %s1163, 8
          %s1165 = scalar_lea.vmem [#allocation3], %s1164
          %1166 = dma.done %s1162, 128
        $region96: #{tpu_custom_call.1} parent=91 // pred_fallthru
          _
      $region92: #{tpu_custom_call.1} parent=5 // pred_fallthru
        _
    $region6: #{tpu_custom_call.1} parent=1 // loop_footer
      %s27 = sadd.s32 1, %s23
    $region7: #{tpu_custom_call.1} parent=1 // loop_footer_branch
      %22 = sbr.rel target = $region3
    $region8: #{tpu_custom_call.1} parent=1 // loop_exit
      _
    %1167 = vsyncpa [#allocation4], 1
    %s1168 = scalar_lea.sflag [#allocation4], 1
    %1169 = vsyncpa %s1168, 1

</llo_original>
